<compile_context>
chip_gen: v5e
topology: v5e:2x2
jax: 0.10.0
libtpu: 0.0.40
codegen_flags: <defaults>
</compile_context>

<pallas_src>
import jax
import jax.numpy as jnp
from jax.experimental import pallas as pl
from jax.experimental.pallas import tpu as pltpu

KH = KW = 3  # kSize = 3, padding = (kSize - 1) // 2 = 1, stride = 1


def _rdb_conv_kernel(xc_ref, xt_ref, xb_ref, w_ref, b_ref, o_ref):
    """Fused 3x3 same-conv + bias + ReLU + channel-concat for one row tile.

    xc_ref: (1, TH, W, Cin)    core rows of this tile
    xt_ref: (1, 1,  W, Cin)    row above the tile (index clamped at image top)
    xb_ref: (1, 1,  W, Cin)    row below the tile (index clamped at image bottom)
    w_ref : (KH, KW*Cin, G)    conv weights, one (kw, cin)-folded slab per kh
    b_ref : (1, G)  float32    bias
    o_ref : (1, TH, W, Cin+G)  [ x | relu(conv(x)+b) ]
    """
    i = pl.program_id(1)
    n_tiles = pl.num_programs(1)
    _, TH, W, Cin = xc_ref.shape
    G = w_ref.shape[-1]

    core = xc_ref[0]                                      # (TH, W, Cin)
    t = xt_ref[0, 0]
    btm = xb_ref[0, 0]
    # Clamped halo rows become zero "same" padding at the image edges
    # (T == 1 zeroes both, which is the correct whole-image case).
    top = jnp.where(i == 0, jnp.zeros_like(t), t)         # (W, Cin)
    bot = jnp.where(i == n_tiles - 1, jnp.zeros_like(btm), btm)

    # Zero-padded (TH+2, W+2, Cin) tile; cast ONCE to the matmul input dtype
    # (bf16 on v6e/v7x when requested, f32 otherwise).
    rows = jnp.concatenate([top[None], core, bot[None]], axis=0)   # (TH+2, W, Cin)
    zcol = jnp.zeros((TH + 2, 1, Cin), core.dtype)
    xpad = jnp.concatenate([zcol, rows, zcol], axis=1).astype(w_ref.dtype)

    # Per-kh im2col: 3 dots of K = KW*Cin accumulated in f32.  3x smaller
    # im2col temporary than a single 9*Cin patch (fits v7x 64 MiB VMEM) while
    # keeping M = TH*W large; weights stay VMEM-resident (constant index_map).
    acc = jnp.zeros((TH * W, G), jnp.float32)
    for kh in range(KH):
        slab = xpad[kh:kh + TH]                            # (TH, W+2, Cin)
        patch = jnp.concatenate(
            [slab[:, kw:kw + W, :] for kw in range(KW)], axis=-1)  # (TH, W, 3*Cin)
        acc = acc + jnp.dot(patch.reshape(TH * W, KW * Cin), w_ref[kh],
                            preferred_element_type=jnp.float32)

    act = jnp.maximum(acc + b_ref[...], 0.0)               # bias already f32
    act = act.reshape(TH, W, G).astype(o_ref.dtype)

    # Fused torch.cat((x, out), channel): two plain stores into the same
    # output block — no in-vreg lane concatenate on the store path.
    o_ref[0, :, :, :Cin] = core
    o_ref[0, :, :, Cin:] = act


def prepare_params(w_oihw, b, compute_dtype=None):
    """PyTorch Conv2d params -> kernel layout.  Do ONCE at parameter-load time.

    compute_dtype=None keeps the parameter dtype (strict f32 numerics);
    jnp.bfloat16 enables the MXU-native fast path on v6e/v7x.
    """
    G, Cin, kh, kw = w_oihw.shape
    # (G, Cin, KH, KW) -> (KH, KW, Cin, G) -> (KH, KW*Cin, G); the (kw, cin)
    # K-order matches the per-kh im2col patch concat in the kernel.
    wk = jnp.transpose(w_oihw, (2, 3, 1, 0)).reshape(kh, kw * Cin, G)
    if compute_dtype is not None:
        wk = wk.astype(compute_dtype)
    bk = b.astype(jnp.float32).reshape(1, G)
    return wk, bk


def _vmem_capacity_bytes():
    try:
        cap = getattr(pltpu.get_tpu_info(), "vmem_capacity_bytes", None)
        if cap:
            return int(cap)
    except Exception:
        pass
    return 64 * 1024 * 1024  # conservative default (v7x per-core VMEM)


def _tile_bytes(TH, W, Cin, G, in_bytes, cmp_bytes):
    """Rough per-grid-step VMEM footprint of a (TH, W) row tile."""
    core = TH * W * Cin * in_bytes
    out = TH * W * (Cin + G) * in_bytes
    halo = 2 * W * Cin * in_bytes
    blocks = 2 * (core + out + halo)               # double-buffered pipeline blocks
    xpad = (TH + 2) * (W + 2) * Cin * cmp_bytes
    patch = TH * W * KW * Cin * cmp_bytes          # one kh slab of im2col at a time
    acc = TH * W * G * 4
    act = TH * W * G * in_bytes
    temps = core + xpad + patch + acc + act
    weights = KH * KW * Cin * G * cmp_bytes + G * 4
    return blocks + 2 * temps + weights            # 2x fudge on value temporaries


def _pick_row_tile(N, H, W, Cin, G, in_bytes, cmp_bytes, vmem_cap):
    """Largest divisor of H whose footprint fits ~half of VMEM, while keeping
    at least 2 grid steps overall (dual-TensorCore / megacore friendliness)."""
    budget = vmem_cap // 2
    divisors = [d for d in range(1, H + 1) if H % d == 0]
    th = 1
    for d in divisors:
        if _tile_bytes(d, W, Cin, G, in_bytes, cmp_bytes) <= budget:
            th = d
    if N * (H // th) < 2:
        smaller = [d for d in divisors if d < th]
        if smaller:
            th = smaller[-1]
    return th


def rdb_conv_nhwc(x_nhwc, wk, bk, *, row_tile=None):
    """x_nhwc: (N, H, W, Cin) -> (N, H, W, Cin + G).  A full RDN should stay
    NHWC end-to-end and chain this directly (channels on the lane axis)."""
    N, H, W, Cin = x_nhwc.shape
    assert wk.shape[0] == KH and wk.shape[1] == KW * Cin
    G = wk.shape[-1]

    in_bytes = x_nhwc.dtype.itemsize
    cmp_bytes = wk.dtype.itemsize
    vmem_cap = _vmem_capacity_bytes()
    TH = (_pick_row_tile(N, H, W, Cin, G, in_bytes, cmp_bytes, vmem_cap)
          if row_tile is None else row_tile)
    assert H % TH == 0, "row_tile must divide H"
    T = H // TH

    # 96 MiB on 128-MiB-VMEM parts (v5e/v6e), 48 MiB on 64-MiB parts (v7x).
    vmem_limit = max(32 * 1024 * 1024,
                     min(int(0.75 * vmem_cap), 96 * 1024 * 1024))

    core_spec = pl.BlockSpec((1, TH, W, Cin), lambda n, i: (n, i, 0, 0))
    # Halo rows: 1-row blocks with clamped row indices (edge rows are replaced
    # by zero padding in-kernel).  With VMEM-sized TH these two small DMAs are
    # a negligible fraction of the tile traffic.
    top_spec = pl.BlockSpec(
        (1, 1, W, Cin), lambda n, i: (n, jnp.maximum(i * TH - 1, 0), 0, 0))
    bot_spec = pl.BlockSpec(
        (1, 1, W, Cin), lambda n, i: (n, jnp.minimum((i + 1) * TH, H - 1), 0, 0))

    return pl.pallas_call(
        _rdb_conv_kernel,
        out_shape=jax.ShapeDtypeStruct((N, H, W, Cin + G), x_nhwc.dtype),
        grid=(N, T),
        in_specs=[
            core_spec,
            top_spec,
            bot_spec,
            pl.BlockSpec((KH, KW * Cin, G), lambda n, i: (0, 0, 0)),
            pl.BlockSpec((1, G), lambda n, i: (0, 0)),
        ],
        out_specs=pl.BlockSpec((1, TH, W, Cin + G), lambda n, i: (n, i, 0, 0)),
        compiler_params=pltpu.CompilerParams(
            dimension_semantics=("parallel", "parallel"),
            vmem_limit_bytes=vmem_limit),
    )(x_nhwc, x_nhwc, x_nhwc, wk, bk)


def rdb_conv(x_nchw, w, b, *, row_tile=None, compute_dtype=None):
    """NCHW wrapper matching the PyTorch module interface.

    x_nchw: (N, Cin, H, W); w: (G, Cin, 3, 3); b: (G,).
    Returns (N, Cin + G, H, W).  The layout transposes exist only to match the
    PyTorch reference; a full model should stay NHWC and call rdb_conv_nhwc.
    """
    wk, bk = prepare_params(w, b, compute_dtype=compute_dtype)
    x = jnp.transpose(x_nchw, (0, 2, 3, 1))            # NCHW -> NHWC
    y = rdb_conv_nhwc(x, wk, bk, row_tile=row_tile)
    return jnp.transpose(y, (0, 3, 1, 2))              # NHWC -> NCHW


def _reference(x_nchw, w, b):
    """Pure-JAX reference matching PyTorch RDB_Conv semantics (NCHW)."""
    dn = jax.lax.conv_dimension_numbers(x_nchw.shape, w.shape,
                                        ("NCHW", "OIHW", "NCHW"))
    y = jax.lax.conv_general_dilated(x_nchw, w, (1, 1), "SAME",
                                     dimension_numbers=dn)
    y = jax.nn.relu(y + b.reshape(1, -1, 1, 1))
    return jnp.concatenate([x_nchw, y], axis=1)


if __name__ == "__main__":
    key = jax.random.PRNGKey(0)
    k_x, k_w, k_b = jax.random.split(key, 3)

    # RDB_Conv(inChannels=4, growRate=8), batch=2, spatial=16x16.
    N, Cin, H, W = 2, 4, 16, 16
    G = 8

    x = jax.random.normal(k_x, (N, Cin, H, W), jnp.float32)
    w = jax.random.normal(k_w, (G, Cin, KH, KW), jnp.float32) * 0.1
    b = jax.random.normal(k_b, (G,), jnp.float32) * 0.1

    ref = _reference(x, w, b)

    # 1) Auto tile sizing (whole image height per step here -> grid (2, 1)),
    #    strict f32 numerics.
    out = jax.block_until_ready(rdb_conv(x, w, b))
    assert out.shape == (N, Cin + G, H, W)
    assert jnp.allclose(out, ref, atol=1e-3, rtol=1e-3), "f32 auto-tile mismatch"

    # 2) Forced row_tile=8 -> grid (2, 2): exercises the halo / edge-pad paths.
    out_t = jax.block_until_ready(rdb_conv(x, w, b, row_tile=8))
    assert jnp.allclose(out_t, ref, atol=1e-3, rtol=1e-3), "tiled-halo mismatch"

    # 3) bf16 MXU-native path (v6e/v7x perf recommendation), looser tolerance.
    out_bf = jax.block_until_ready(rdb_conv(x, w, b, compute_dtype=jnp.bfloat16))
    assert jnp.allclose(out_bf, ref, atol=3e-2, rtol=3e-2), "bf16 path mismatch"

    print("KERNEL_OK")
</pallas_src>

<mosaic_0001>
module attributes {stable_mosaic.version = 11 : i64} {
  func.func @_rdb_conv_kernel(%arg0: i32, %arg1: i32, %arg2: memref<1x16x16x4xf32, #tpu.memory_space<vmem>>, %arg3: memref<1x1x16x4xf32, #tpu.memory_space<vmem>>, %arg4: memref<1x1x16x4xf32, #tpu.memory_space<vmem>>, %arg5: memref<3x12x8xf32, #tpu.memory_space<vmem>>, %arg6: memref<1x8xf32, #tpu.memory_space<vmem>>, %arg7: memref<1x16x16x12xf32, #tpu.memory_space<vmem>>) attributes {dimension_semantics = [#tpu.dimension_semantics<parallel>, #tpu.dimension_semantics<parallel>], iteration_bounds = array<i64: 2, 1>, scalar_prefetch = 0 : i64, scratch_operands = 0 : i64, tpu.core_type = #tpu.core_type<tc>, window_params = [{transform_indices = @transform_0, window_bounds = array<i64: 1, 16, 16, 4>}, {transform_indices = @transform_1, window_bounds = array<i64: 1, 1, 16, 4>}, {transform_indices = @transform_2, window_bounds = array<i64: 1, 1, 16, 4>}, {pipeline_mode = #tpu.pipeline_mode<synchronous>, transform_indices = @transform_3, window_bounds = array<i64: 3, 12, 8>}, {pipeline_mode = #tpu.pipeline_mode<synchronous>, transform_indices = @transform_4, window_bounds = array<i64: 1, 8>}, {transform_indices = @transform_5, window_bounds = array<i64: 1, 16, 16, 12>}]} {
    %c0 = arith.constant 0 : index
    %c0_0 = arith.constant 0 : index
    %c0_1 = arith.constant 0 : index
    %c0_2 = arith.constant 0 : index
    %0 = vector.load %arg2[%c0, %c0_0, %c0_1, %c0_2] : memref<1x16x16x4xf32, #tpu.memory_space<vmem>>, vector<1x16x16x4xf32>
    %1 = vector.shape_cast %0 : vector<1x16x16x4xf32> to vector<16x16x4xf32>
    %c0_3 = arith.constant 0 : index
    %c0_4 = arith.constant 0 : index
    %c0_5 = arith.constant 0 : index
    %c0_6 = arith.constant 0 : index
    %2 = vector.load %arg3[%c0_3, %c0_4, %c0_5, %c0_6] : memref<1x1x16x4xf32, #tpu.memory_space<vmem>>, vector<1x1x16x4xf32>
    %3 = vector.shape_cast %2 : vector<1x1x16x4xf32> to vector<16x4xf32>
    %c0_7 = arith.constant 0 : index
    %c0_8 = arith.constant 0 : index
    %c0_9 = arith.constant 0 : index
    %c0_10 = arith.constant 0 : index
    %4 = vector.load %arg4[%c0_7, %c0_8, %c0_9, %c0_10] : memref<1x1x16x4xf32, #tpu.memory_space<vmem>>, vector<1x1x16x4xf32>
    %5 = vector.shape_cast %4 : vector<1x1x16x4xf32> to vector<16x4xf32>
    %c0_i32 = arith.constant 0 : i32
    %6 = arith.cmpi eq, %arg1, %c0_i32 : i32
    %cst = arith.constant 0.000000e+00 : f32
    %7 = vector.broadcast %cst : f32 to vector<16x4xf32>
    %8 = arith.select %6, %7, %3 : vector<16x4xf32>
    %c0_i32_11 = arith.constant 0 : i32
    %9 = arith.cmpi eq, %arg1, %c0_i32_11 : i32
    %cst_12 = arith.constant 0.000000e+00 : f32
    %10 = vector.broadcast %cst_12 : f32 to vector<16x4xf32>
    %11 = arith.select %9, %10, %5 : vector<16x4xf32>
    %12 = vector.shape_cast %8 : vector<16x4xf32> to vector<1x16x4xf32>
    %13 = vector.shape_cast %11 : vector<16x4xf32> to vector<1x16x4xf32>
    %14 = tpu.concatenate %12, %1, %13 in 0 : vector<1x16x4xf32>, vector<16x16x4xf32>, vector<1x16x4xf32> -> vector<18x16x4xf32>
    %cst_13 = arith.constant 0.000000e+00 : f32
    %15 = vector.broadcast %cst_13 : f32 to vector<18x1x4xf32>
    %16 = tpu.concatenate %15, %14, %15 in 1 : vector<18x1x4xf32>, vector<18x16x4xf32>, vector<18x1x4xf32> -> vector<18x18x4xf32>
    %cst_14 = arith.constant 0.000000e+00 : f32
    %17 = vector.broadcast %cst_14 : f32 to vector<256x8xf32>
    %18 = vector.extract_strided_slice %16 {offsets = [0, 0, 0], sizes = [16, 18, 4], strides = [1, 1, 1]} : vector<18x18x4xf32> to vector<16x18x4xf32>
    %19 = vector.extract_strided_slice %18 {offsets = [0, 0, 0], sizes = [16, 16, 4], strides = [1, 1, 1]} : vector<16x18x4xf32> to vector<16x16x4xf32>
    %20 = vector.extract_strided_slice %18 {offsets = [0, 1, 0], sizes = [16, 16, 4], strides = [1, 1, 1]} : vector<16x18x4xf32> to vector<16x16x4xf32>
    %21 = vector.extract_strided_slice %18 {offsets = [0, 2, 0], sizes = [16, 16, 4], strides = [1, 1, 1]} : vector<16x18x4xf32> to vector<16x16x4xf32>
    %22 = tpu.concatenate %19, %20, %21 in 2 : vector<16x16x4xf32>, vector<16x16x4xf32>, vector<16x16x4xf32> -> vector<16x16x12xf32>
    %23 = vector.shape_cast %22 : vector<16x16x12xf32> to vector<256x12xf32>
    %c0_15 = arith.constant 0 : index
    %c0_16 = arith.constant 0 : index
    %c0_17 = arith.constant 0 : index
    %24 = vector.load %arg5[%c0_15, %c0_16, %c0_17] : memref<3x12x8xf32, #tpu.memory_space<vmem>>, vector<1x12x8xf32>
    %25 = vector.shape_cast %24 : vector<1x12x8xf32> to vector<12x8xf32>
    %cst_18 = arith.constant dense<0.000000e+00> : vector<256x8xf32>
    %26 = tpu.matmul %23, %25, %cst_18 {dimension_numbers = #tpu.dot_dimension_numbers<[1], [0], [0], [1], [0, 0, 1, 1], [], []>} : vector<256x12xf32>, vector<12x8xf32>, vector<256x8xf32> -> vector<256x8xf32>
    %27 = arith.addf %17, %26 : vector<256x8xf32>
    %28 = vector.extract_strided_slice %16 {offsets = [1, 0, 0], sizes = [16, 18, 4], strides = [1, 1, 1]} : vector<18x18x4xf32> to vector<16x18x4xf32>
    %29 = vector.extract_strided_slice %28 {offsets = [0, 0, 0], sizes = [16, 16, 4], strides = [1, 1, 1]} : vector<16x18x4xf32> to vector<16x16x4xf32>
    %30 = vector.extract_strided_slice %28 {offsets = [0, 1, 0], sizes = [16, 16, 4], strides = [1, 1, 1]} : vector<16x18x4xf32> to vector<16x16x4xf32>
    %31 = vector.extract_strided_slice %28 {offsets = [0, 2, 0], sizes = [16, 16, 4], strides = [1, 1, 1]} : vector<16x18x4xf32> to vector<16x16x4xf32>
    %32 = tpu.concatenate %29, %30, %31 in 2 : vector<16x16x4xf32>, vector<16x16x4xf32>, vector<16x16x4xf32> -> vector<16x16x12xf32>
    %33 = vector.shape_cast %32 : vector<16x16x12xf32> to vector<256x12xf32>
    %c1 = arith.constant 1 : index
    %c0_19 = arith.constant 0 : index
    %c0_20 = arith.constant 0 : index
    %34 = vector.load %arg5[%c1, %c0_19, %c0_20] : memref<3x12x8xf32, #tpu.memory_space<vmem>>, vector<1x12x8xf32>
    %35 = vector.shape_cast %34 : vector<1x12x8xf32> to vector<12x8xf32>
    %cst_21 = arith.constant dense<0.000000e+00> : vector<256x8xf32>
    %36 = tpu.matmul %33, %35, %cst_21 {dimension_numbers = #tpu.dot_dimension_numbers<[1], [0], [0], [1], [0, 0, 1, 1], [], []>} : vector<256x12xf32>, vector<12x8xf32>, vector<256x8xf32> -> vector<256x8xf32>
    %37 = arith.addf %27, %36 : vector<256x8xf32>
    %38 = vector.extract_strided_slice %16 {offsets = [2, 0, 0], sizes = [16, 18, 4], strides = [1, 1, 1]} : vector<18x18x4xf32> to vector<16x18x4xf32>
    %39 = vector.extract_strided_slice %38 {offsets = [0, 0, 0], sizes = [16, 16, 4], strides = [1, 1, 1]} : vector<16x18x4xf32> to vector<16x16x4xf32>
    %40 = vector.extract_strided_slice %38 {offsets = [0, 1, 0], sizes = [16, 16, 4], strides = [1, 1, 1]} : vector<16x18x4xf32> to vector<16x16x4xf32>
    %41 = vector.extract_strided_slice %38 {offsets = [0, 2, 0], sizes = [16, 16, 4], strides = [1, 1, 1]} : vector<16x18x4xf32> to vector<16x16x4xf32>
    %42 = tpu.concatenate %39, %40, %41 in 2 : vector<16x16x4xf32>, vector<16x16x4xf32>, vector<16x16x4xf32> -> vector<16x16x12xf32>
    %43 = vector.shape_cast %42 : vector<16x16x12xf32> to vector<256x12xf32>
    %c2 = arith.constant 2 : index
    %c0_22 = arith.constant 0 : index
    %c0_23 = arith.constant 0 : index
    %44 = vector.load %arg5[%c2, %c0_22, %c0_23] : memref<3x12x8xf32, #tpu.memory_space<vmem>>, vector<1x12x8xf32>
    %45 = vector.shape_cast %44 : vector<1x12x8xf32> to vector<12x8xf32>
    %cst_24 = arith.constant dense<0.000000e+00> : vector<256x8xf32>
    %46 = tpu.matmul %43, %45, %cst_24 {dimension_numbers = #tpu.dot_dimension_numbers<[1], [0], [0], [1], [0, 0, 1, 1], [], []>} : vector<256x12xf32>, vector<12x8xf32>, vector<256x8xf32> -> vector<256x8xf32>
    %47 = arith.addf %37, %46 : vector<256x8xf32>
    %c0_25 = arith.constant 0 : index
    %c0_26 = arith.constant 0 : index
    %48 = vector.load %arg6[%c0_25, %c0_26] : memref<1x8xf32, #tpu.memory_space<vmem>>, vector<1x8xf32>
    %49 = vector.broadcast %48 : vector<1x8xf32> to vector<256x8xf32>
    %50 = arith.addf %47, %49 : vector<256x8xf32>
    %cst_27 = arith.constant 0.000000e+00 : f32
    %51 = vector.broadcast %cst_27 : f32 to vector<256x8xf32>
    %52 = arith.maximumf %50, %51 : vector<256x8xf32>
    %53 = vector.shape_cast %52 : vector<256x8xf32> to vector<16x16x8xf32>
    %c0_28 = arith.constant 0 : index
    %c0_29 = arith.constant 0 : index
    %c0_30 = arith.constant 0 : index
    %c0_31 = arith.constant 0 : index
    %54 = vector.load %arg7[%c0_28, %c0_29, %c0_30, %c0_31] : memref<1x16x16x12xf32, #tpu.memory_space<vmem>>, vector<1x16x16x4xf32>
    %55 = vector.shape_cast %54 : vector<1x16x16x4xf32> to vector<16x16x4xf32>
    %56 = vector.shape_cast %1 : vector<16x16x4xf32> to vector<1x16x16x4xf32>
    tpu.vector_store %arg7[%c0_28, %c0_29, %c0_30, %c0_31], %56 {strides = array<i32>} : memref<1x16x16x12xf32, #tpu.memory_space<vmem>>, vector<1x16x16x4xf32>,
    %c0_32 = arith.constant 0 : index
    %c0_33 = arith.constant 0 : index
    %c0_34 = arith.constant 0 : index
    %c4 = arith.constant 4 : index
    %57 = vector.load %arg7[%c0_32, %c0_33, %c0_34, %c4] : memref<1x16x16x12xf32, #tpu.memory_space<vmem>>, vector<1x16x16x8xf32>
    %58 = vector.shape_cast %57 : vector<1x16x16x8xf32> to vector<16x16x8xf32>
    %59 = vector.shape_cast %53 : vector<16x16x8xf32> to vector<1x16x16x8xf32>
    tpu.vector_store %arg7[%c0_32, %c0_33, %c0_34, %c4], %59 {strides = array<i32>} : memref<1x16x16x12xf32, #tpu.memory_space<vmem>>, vector<1x16x16x8xf32>,
    return
  }
  func.func @transform_0(%arg0: i32, %arg1: i32) -> (i32, i32, i32, i32) {
    %c0_i32 = arith.constant 0 : i32
    %c0_i32_0 = arith.constant 0 : i32
    %c0_i32_1 = arith.constant 0 : i32
    return %arg0, %arg1, %c0_i32, %c0_i32_0 : i32, i32, i32, i32
  }
  func.func @transform_1(%arg0: i32, %arg1: i32) -> (i32, i32, i32, i32) {
    %c16_i32 = arith.constant 16 : i32
    %0 = arith.muli %arg1, %c16_i32 : i32
    %c1_i32 = arith.constant 1 : i32
    %1 = arith.subi %0, %c1_i32 : i32
    %c0_i32 = arith.constant 0 : i32
    %2 = arith.maxsi %1, %c0_i32 : i32
    %c0_i32_0 = arith.constant 0 : i32
    %c0_i32_1 = arith.constant 0 : i32
    %c0_i32_2 = arith.constant 0 : i32
    return %arg0, %2, %c0_i32_0, %c0_i32_1 : i32, i32, i32, i32
  }
  func.func @transform_2(%arg0: i32, %arg1: i32) -> (i32, i32, i32, i32) {
    %c1_i32 = arith.constant 1 : i32
    %0 = arith.addi %arg1, %c1_i32 : i32
    %c16_i32 = arith.constant 16 : i32
    %1 = arith.muli %0, %c16_i32 : i32
    %c15_i32 = arith.constant 15 : i32
    %2 = arith.minsi %1, %c15_i32 : i32
    %c0_i32 = arith.constant 0 : i32
    %c0_i32_0 = arith.constant 0 : i32
    %c0_i32_1 = arith.constant 0 : i32
    return %arg0, %2, %c0_i32, %c0_i32_0 : i32, i32, i32, i32
  }
  func.func @transform_3(%arg0: i32, %arg1: i32) -> (i32, i32, i32) {
    %c0_i32 = arith.constant 0 : i32
    %c0_i32_0 = arith.constant 0 : i32
    %c0_i32_1 = arith.constant 0 : i32
    %c0_i32_2 = arith.constant 0 : i32
    return %c0_i32, %c0_i32_0, %c0_i32_1 : i32, i32, i32
  }
  func.func @transform_4(%arg0: i32, %arg1: i32) -> (i32, i32) {
    %c0_i32 = arith.constant 0 : i32
    %c0_i32_0 = arith.constant 0 : i32
    %c0_i32_1 = arith.constant 0 : i32
    return %c0_i32, %c0_i32_0 : i32, i32
  }
  func.func @transform_5(%arg0: i32, %arg1: i32) -> (i32, i32, i32, i32) {
    %c0_i32 = arith.constant 0 : i32
    %c0_i32_0 = arith.constant 0 : i32
    %c0_i32_1 = arith.constant 0 : i32
    return %arg0, %arg1, %c0_i32, %c0_i32_0 : i32, i32, i32, i32
  }
}

</mosaic_0001>

<llo_original>
// kernel: tpu_custom_call.1
$region0: #{tpu_custom_call.1}
  #allocation0 [shape = 'u32[]', space=smem, size = 0x4, offset = 0x4, fixed_abs, tag = 'smem constant byte address 0x4 - core index']
  #allocation1 [shape = 'u32[72,128]{1,0:T(1,128)}', space=vmem, size = 0x9000, scoped, tag = 'internal scratch']
  %s0 = inlined_call_operand.vmem [shape: f32[2,16,16,4], index: 0, kind: input, shape index: {}]
  %s1 = inlined_call_operand.vmem [shape: f32[2,16,16,4], index: 1, kind: input, shape index: {}]
  %s2 = inlined_call_operand.vmem [shape: f32[2,16,16,4], index: 2, kind: input, shape index: {}]
  %s3 = inlined_call_operand.vmem [shape: f32[3,12,8], index: 3, kind: input, shape index: {}]
  %s4 = inlined_call_operand.vmem [shape: f32[1,8], index: 4, kind: input, shape index: {}]
  %s5 = inlined_call_operand.vmem [shape: f32[2,16,16,12], index: 5, kind: output, shape index: {}]
  %s6 = sld [smem:[#allocation0]]
  $region53: #{tpu_custom_call.1} parent=0
    _
  %s8 = ssub.s32 1, %s6
  %s9 = scalar_select 0, %s8, %s6
  loop: start=0, step=1, limit=4
  $region2: #{tpu_custom_call.1} parent=0 // loop_pre_header
    _
  $region3: #{tpu_custom_call.1} parent=0 // loop_header
    %s11 = sphi 0, %s15
    %p12 = scmp.ge.s32.totalorder %s11, 4
    %s18 = sphi 0, %s30
    %s19 = sphi 0, %s26
    %s20 = sphi 0, %s18
    %s21 = sphi 0, %s19
    %s22 = sphi 0, %s20
    %s23 = sphi 0, %s21
    %s35 = sphi 0, %s37
    %s38 = sphi 0, %s35
    %s39 = sphi 0, %s38
    %s55 = sphi 0, %s39
    %s71 = sphi 0, %s73
    %s74 = sphi 0, %s71
    %s75 = sphi 0, %s74
    %s91 = sphi 0, %s75
    %s107 = sphi 0, %s109
    %s110 = sphi 0, %s107
    %s111 = sphi 0, %s110
    %s127 = sphi 0, %s111
    %s131 = sphi 0, %s131
    %s133 = sphi 0, %s131
    %s134 = sphi 0, %s133
    %s148 = sphi 0, %s134
    %s152 = sphi 0, %s152
    %s154 = sphi 0, %s152
    %s155 = sphi 0, %s154
    %s169 = sphi 0, %s155
    %s177 = sphi 0, %s179
    %s180 = sphi 0, %s177
    %s181 = sphi 0, %s180
    %s197 = sphi 0, %s181
  $region4: #{tpu_custom_call.1} parent=0 // loop_header_branch
    %14 = sbr.rel (%p12) target = $region8
  $region5: #{tpu_custom_call.1} parent=0 // loop_body
    %s16 = ssub.s32 %s11, 1
    %s17 = ssub.s32 %s11, 2
    %s24 = sadd.s32 1, %s19
    %p25 = scmp.ge.s32.totalorder %s24, 1
    %s26 = scalar_select %p25, 0, %s24
    %s27 = sadd.s32 1, %s18
    %s28 = scalar_select %p25, %s27, %s18
    %p29 = scmp.ge.s32.totalorder %s28, 2
    %s30 = scalar_select %p29, 0, %s28
    %s31 = ssub.s32 %s18, %s30
    %s32 = ssub.s32 %s19, %s26
    %s33 = sor.u32 %s31, %s32
    %p34 = scmp.eq.s32.totalorder %s33, 0
    %s36 = sadd.s32 %s35, 1
    %s37 = scalar_select %p34, %s35, %s36
    %p40 = pneg %p34
    %p41 = scmp.eq.s32.totalorder %s11, 1
    %p42 = por %p40, %p41
    %p43 = scmp.ne.s32.totalorder %s35, %s38
    %p44 = scmp.eq.s32.totalorder %s11, 0
    %p45 = por %p43, %p44
    %p46 = scmp.ne.s32.totalorder %s35, %s38
    %p47 = scmp.eq.s32.totalorder %s16, 1
    %p48 = por %p46, %p47
    %p49 = scmp.ne.s32.totalorder %s38, %s39
    %p50 = scmp.eq.s32.totalorder %s16, 0
    %p51 = por %p49, %p50
    %p52 = scmp.ne.s32.totalorder %s38, %s39
    %p53 = scmp.eq.s32.totalorder %s17, 1
    %p54 = por %p52, %p53
    %p56 = scmp.ne.s32.totalorder %s39, %s55
    %p57 = scmp.eq.s32.totalorder %s17, 0
    %p58 = por %p56, %p57
    %s59 = smul.u32 %s19, 16
    %s60 = ssub.s32 %s59, 1
    %p61 = scmp.gt.s32.totalorder %s60, 0
    %s62 = scalar_select %p61, %s60, 0
    %s63 = smul.u32 %s26, 16
    %s64 = ssub.s32 %s63, 1
    %p65 = scmp.gt.s32.totalorder %s64, 0
    %s66 = scalar_select %p65, %s64, 0
    %s67 = ssub.s32 %s18, %s30
    %s68 = ssub.s32 %s62, %s66
    %s69 = sor.u32 %s67, %s68
    %p70 = scmp.eq.s32.totalorder %s69, 0
    %s72 = sadd.s32 %s71, 1
    %s73 = scalar_select %p70, %s71, %s72
    %p76 = pneg %p70
    %p77 = scmp.eq.s32.totalorder %s11, 1
    %p78 = por %p76, %p77
    %p79 = scmp.ne.s32.totalorder %s71, %s74
    %p80 = scmp.eq.s32.totalorder %s11, 0
    %p81 = por %p79, %p80
    %p82 = scmp.ne.s32.totalorder %s71, %s74
    %p83 = scmp.eq.s32.totalorder %s16, 1
    %p84 = por %p82, %p83
    %p85 = scmp.ne.s32.totalorder %s74, %s75
    %p86 = scmp.eq.s32.totalorder %s16, 0
    %p87 = por %p85, %p86
    %p88 = scmp.ne.s32.totalorder %s74, %s75
    %p89 = scmp.eq.s32.totalorder %s17, 1
    %p90 = por %p88, %p89
    %p92 = scmp.ne.s32.totalorder %s75, %s91
    %p93 = scmp.eq.s32.totalorder %s17, 0
    %p94 = por %p92, %p93
    %s95 = sadd.s32 %s19, 1
    %s96 = smul.u32 %s95, 16
    %p97 = scmp.lt.s32.totalorder %s96, 15
    %s98 = scalar_select %p97, %s96, 15
    %s99 = sadd.s32 %s26, 1
    %s100 = smul.u32 %s99, 16
    %p101 = scmp.lt.s32.totalorder %s100, 15
    %s102 = scalar_select %p101, %s100, 15
    %s103 = ssub.s32 %s18, %s30
    %s104 = ssub.s32 %s98, %s102
    %s105 = sor.u32 %s103, %s104
    %p106 = scmp.eq.s32.totalorder %s105, 0
    %s108 = sadd.s32 %s107, 1
    %s109 = scalar_select %p106, %s107, %s108
    %p112 = pneg %p106
    %p113 = scmp.eq.s32.totalorder %s11, 1
    %p114 = por %p112, %p113
    %p115 = scmp.ne.s32.totalorder %s107, %s110
    %p116 = scmp.eq.s32.totalorder %s11, 0
    %p117 = por %p115, %p116
    %p118 = scmp.ne.s32.totalorder %s107, %s110
    %p119 = scmp.eq.s32.totalorder %s16, 1
    %p120 = por %p118, %p119
    %p121 = scmp.ne.s32.totalorder %s110, %s111
    %p122 = scmp.eq.s32.totalorder %s16, 0
    %p123 = por %p121, %p122
    %p124 = scmp.ne.s32.totalorder %s110, %s111
    %p125 = scmp.eq.s32.totalorder %s17, 1
    %p126 = por %p124, %p125
    %p128 = scmp.ne.s32.totalorder %s111, %s127
    %p129 = scmp.eq.s32.totalorder %s17, 0
    %p130 = por %p128, %p129
    %s132 = sadd.s32 %s131, 1
    %p135 = scmp.eq.s32.totalorder %s11, 1
    %p136 = scmp.ne.s32.totalorder %s131, %s133
    %p137 = scmp.eq.s32.totalorder %s11, 0
    %p138 = por %p136, %p137
    %p139 = scmp.ne.s32.totalorder %s131, %s133
    %p140 = scmp.eq.s32.totalorder %s16, 1
    %p141 = por %p139, %p140
    %p142 = scmp.ne.s32.totalorder %s133, %s134
    %p143 = scmp.eq.s32.totalorder %s16, 0
    %p144 = por %p142, %p143
    %p145 = scmp.ne.s32.totalorder %s133, %s134
    %p146 = scmp.eq.s32.totalorder %s17, 1
    %p147 = por %p145, %p146
    %p149 = scmp.ne.s32.totalorder %s134, %s148
    %p150 = scmp.eq.s32.totalorder %s17, 0
    %p151 = por %p149, %p150
    %s153 = sadd.s32 %s152, 1
    %p156 = scmp.eq.s32.totalorder %s11, 1
    %p157 = scmp.ne.s32.totalorder %s152, %s154
    %p158 = scmp.eq.s32.totalorder %s11, 0
    %p159 = por %p157, %p158
    %p160 = scmp.ne.s32.totalorder %s152, %s154
    %p161 = scmp.eq.s32.totalorder %s16, 1
    %p162 = por %p160, %p161
    %p163 = scmp.ne.s32.totalorder %s154, %s155
    %p164 = scmp.eq.s32.totalorder %s16, 0
    %p165 = por %p163, %p164
    %p166 = scmp.ne.s32.totalorder %s154, %s155
    %p167 = scmp.eq.s32.totalorder %s17, 1
    %p168 = por %p166, %p167
    %p170 = scmp.ne.s32.totalorder %s155, %s169
    %p171 = scmp.eq.s32.totalorder %s17, 0
    %p172 = por %p170, %p171
    %s173 = ssub.s32 %s18, %s30
    %s174 = ssub.s32 %s19, %s26
    %s175 = sor.u32 %s173, %s174
    %p176 = scmp.eq.s32.totalorder %s175, 0
    %s178 = sadd.s32 %s177, 1
    %s179 = scalar_select %p176, %s177, %s178
    %p182 = pneg %p176
    %p183 = scmp.eq.s32.totalorder %s11, 1
    %p184 = por %p182, %p183
    %p185 = scmp.ne.s32.totalorder %s177, %s180
    %p186 = scmp.eq.s32.totalorder %s11, 0
    %p187 = por %p185, %p186
    %p188 = scmp.ne.s32.totalorder %s177, %s180
    %p189 = scmp.eq.s32.totalorder %s16, 1
    %p190 = por %p188, %p189
    %p191 = scmp.ne.s32.totalorder %s180, %s181
    %p192 = scmp.eq.s32.totalorder %s16, 0
    %p193 = por %p191, %p192
    %p194 = scmp.ne.s32.totalorder %s180, %s181
    %p195 = scmp.eq.s32.totalorder %s17, 1
    %p196 = por %p194, %p195
    %p198 = scmp.ne.s32.totalorder %s181, %s197
    %p199 = scmp.eq.s32.totalorder %s17, 0
    %p200 = por %p198, %p199
    %p201 = scmp.le.s32.totalorder 1, %s11
    %p202 = scmp.lt.s32.totalorder %s11, 3
    %p203 = pnand %p201, %p202
    %p204 = pneg %p203
    // Predicated region
    $region9: #{tpu_custom_call.1} parent=5 // pred_check
      _
    $region10: #{tpu_custom_call.1} parent=5 // pred_check_branch
      %206 = sbr.rel (%p203) target = $region12
    $region11: #{tpu_custom_call.1} parent=5 // pred_region
      %s207 = ssub.s32 %s11, 1
      // Predicated region
      $region13: #{tpu_custom_call.1} parent=11 // pred_check
        %p208 = pneg %p144
      $region14: #{tpu_custom_call.1} parent=11 // pred_check_branch
        %210 = sbr.rel (%p208) target = $region16
      $region15: #{tpu_custom_call.1} parent=11 // pred_region
        _
      $region16: #{tpu_custom_call.1} parent=11 // pred_fallthru
        _
      // Predicated region
      $region17: #{tpu_custom_call.1} parent=11 // pred_check
        %p211 = pneg %p165
      $region18: #{tpu_custom_call.1} parent=11 // pred_check_branch
        %213 = sbr.rel (%p211) target = $region20
      $region19: #{tpu_custom_call.1} parent=11 // pred_region
        _
      $region20: #{tpu_custom_call.1} parent=11 // pred_fallthru
        _
    $region12: #{tpu_custom_call.1} parent=5 // pred_fallthru
      _
    %p214 = scmp.lt.s32.totalorder %s11, 2
    // Predicated region
    $region21: #{tpu_custom_call.1} parent=5 // pred_check
      %p215 = pneg %p214
    $region22: #{tpu_custom_call.1} parent=5 // pred_check_branch
      %217 = sbr.rel (%p215) target = $region24
    $region23: #{tpu_custom_call.1} parent=5 // pred_region
      // Predicated region
      $region25: #{tpu_custom_call.1} parent=23 // pred_check
        %p218 = pneg %p45
      $region26: #{tpu_custom_call.1} parent=23 // pred_check_branch
        %220 = sbr.rel (%p218) target = $region28
      $region27: #{tpu_custom_call.1} parent=23 // pred_region
        %s221 = smul.u32 16, %s19
        %p222 = scmp.lt.s32.totalorder %s18, 1
        %s223 = scalar_select %p222, %s18, 1
        %p224 = scmp.lt.s32.totalorder %s221, 15
        %s225 = scalar_select %p224, %s221, 15
        %s226 = smul.addr %s225, 2
        %s227 = smul.addr %s223, 32
        %s228 = sadd.s32 %s226, %s227
        %s229 = smul.addr %s228, 8
        %s230 = scalar_lea.vmem %s0, %s229
        %s231 = smul.u32 16, %s19
      $region28: #{tpu_custom_call.1} parent=23 // pred_fallthru
        _
      // Predicated region
      $region29: #{tpu_custom_call.1} parent=23 // pred_check
        %p232 = pneg %p81
      $region30: #{tpu_custom_call.1} parent=23 // pred_check_branch
        %234 = sbr.rel (%p232) target = $region32
      $region31: #{tpu_custom_call.1} parent=23 // pred_region
        %s235 = smul.u32 %s19, 16
        %s236 = ssub.s32 %s235, 1
        %p237 = scmp.gt.s32.totalorder %s236, 0
        %s238 = scalar_select %p237, %s236, 0
        %p239 = scmp.lt.s32.totalorder %s18, 1
        %s240 = scalar_select %p239, %s18, 1
        %p241 = scmp.lt.s32.totalorder %s238, 15
        %s242 = scalar_select %p241, %s238, 15
        %s243 = smul.addr %s242, 2
        %s244 = smul.addr %s240, 32
        %s245 = sadd.s32 %s243, %s244
        %s246 = smul.addr %s245, 8
        %s247 = scalar_lea.vmem %s1, %s246
        %s248 = smul.u32 %s19, 16
        %s249 = ssub.s32 %s248, 1
        %p250 = scmp.gt.s32.totalorder %s249, 0
        %s251 = scalar_select %p250, %s249, 0
      $region32: #{tpu_custom_call.1} parent=23 // pred_fallthru
        _
      // Predicated region
      $region33: #{tpu_custom_call.1} parent=23 // pred_check
        %p252 = pneg %p117
      $region34: #{tpu_custom_call.1} parent=23 // pred_check_branch
        %254 = sbr.rel (%p252) target = $region36
      $region35: #{tpu_custom_call.1} parent=23 // pred_region
        %s255 = sadd.s32 %s19, 1
        %s256 = smul.u32 %s255, 16
        %p257 = scmp.lt.s32.totalorder %s256, 15
        %s258 = scalar_select %p257, %s256, 15
        %p259 = scmp.lt.s32.totalorder %s18, 1
        %s260 = scalar_select %p259, %s18, 1
        %p261 = scmp.lt.s32.totalorder %s258, 15
        %s262 = scalar_select %p261, %s258, 15
        %s263 = smul.addr %s262, 2
        %s264 = smul.addr %s260, 32
        %s265 = sadd.s32 %s263, %s264
        %s266 = smul.addr %s265, 8
        %s267 = scalar_lea.vmem %s2, %s266
        %s268 = sadd.s32 %s19, 1
        %s269 = smul.u32 %s268, 16
        %p270 = scmp.lt.s32.totalorder %s269, 15
        %s271 = scalar_select %p270, %s269, 15
      $region36: #{tpu_custom_call.1} parent=23 // pred_fallthru
        _
    $region24: #{tpu_custom_call.1} parent=5 // pred_fallthru
      _
    %p272 = scmp.le.s32.totalorder 1, %s11
    %p273 = scmp.lt.s32.totalorder %s11, 3
    %p274 = pnand %p272, %p273
    %p275 = pneg %p274
    // Predicated region
    $region37: #{tpu_custom_call.1} parent=5 // pred_check
      _
    $region38: #{tpu_custom_call.1} parent=5 // pred_check_branch
      %277 = sbr.rel (%p274) target = $region40
    $region39: #{tpu_custom_call.1} parent=5 // pred_region
      %s278 = ssub.s32 %s11, 1
      %s279 = smul.u32 16, %s21
      %p280 = scmp.lt.s32.totalorder %s20, 1
      %s281 = scalar_select %p280, %s20, 1
      %p282 = scmp.lt.s32.totalorder %s279, 15
      %s283 = scalar_select %p282, %s279, 15
      %s284 = smul.addr %s283, 2
      %s285 = smul.addr %s281, 32
      %s286 = sadd.s32 %s284, %s285
      %s287 = smul.addr %s286, 8
      %s288 = scalar_lea.vmem %s0, %s287
      %p289 = pneg %p51
      %p290 = pneg %p48
      %s291 = smul.u32 %s21, 16
      %s292 = ssub.s32 %s291, 1
      %p293 = scmp.gt.s32.totalorder %s292, 0
      %s294 = scalar_select %p293, %s292, 0
      %p295 = scmp.lt.s32.totalorder %s20, 1
      %s296 = scalar_select %p295, %s20, 1
      %p297 = scmp.lt.s32.totalorder %s294, 15
      %s298 = scalar_select %p297, %s294, 15
      %s299 = smul.addr %s298, 2
      %s300 = smul.addr %s296, 32
      %s301 = sadd.s32 %s299, %s300
      %s302 = smul.addr %s301, 8
      %s303 = scalar_lea.vmem %s1, %s302
      %p304 = pneg %p87
      %p305 = pneg %p84
      %s306 = sadd.s32 %s21, 1
      %s307 = smul.u32 %s306, 16
      %p308 = scmp.lt.s32.totalorder %s307, 15
      %s309 = scalar_select %p308, %s307, 15
      %p310 = scmp.lt.s32.totalorder %s20, 1
      %s311 = scalar_select %p310, %s20, 1
      %p312 = scmp.lt.s32.totalorder %s309, 15
      %s313 = scalar_select %p312, %s309, 15
      %s314 = smul.addr %s313, 2
      %s315 = smul.addr %s311, 32
      %s316 = sadd.s32 %s314, %s315
      %s317 = smul.addr %s316, 8
      %s318 = scalar_lea.vmem %s2, %s317
      %p319 = pneg %p123
      %p320 = pneg %p120
      %p321 = pneg %p144
      %p322 = pneg %p141
      %p323 = pneg %p165
      %p324 = pneg %p162
      %p325 = pneg %p193
      %p326 = pneg %p190
      %s327 = smul.u32 16, %s21
      %p328 = scmp.lt.s32.totalorder %s20, 1
      %s329 = scalar_select %p328, %s20, 1
      %p330 = scmp.lt.s32.totalorder %s327, 15
      %s331 = scalar_select %p330, %s327, 15
      %s332 = smul.addr %s331, 2
      %s333 = smul.addr %s329, 32
      %s334 = sadd.s32 %s332, %s333
      %s335 = smul.addr %s334, 8
      %s336 = scalar_lea.vmem %s5, %s335
      %s337 = smul.u32 16, %s21
      %p338 = scmp.lt.s32.totalorder %s20, 1
      %s339 = scalar_select %p338, %s20, 1
      %p340 = scmp.lt.s32.totalorder %s337, 15
      %s341 = scalar_select %p340, %s337, 15
      %s342 = smul.addr %s341, 2
      %s343 = smul.addr %s339, 32
      %s344 = sadd.s32 %s342, %s343
      %s345 = smul.addr %s344, 8
      %s346 = scalar_lea.vmem %s0, %s345
      %s347 = smul.u32 16, %s21
      %s348 = smul.u32 %s21, 16
      %s349 = ssub.s32 %s348, 1
      %p350 = scmp.gt.s32.totalorder %s349, 0
      %s351 = scalar_select %p350, %s349, 0
      %p352 = scmp.lt.s32.totalorder %s20, 1
      %s353 = scalar_select %p352, %s20, 1
      %p354 = scmp.lt.s32.totalorder %s351, 15
      %s355 = scalar_select %p354, %s351, 15
      %s356 = smul.addr %s355, 2
      %s357 = smul.addr %s353, 32
      %s358 = sadd.s32 %s356, %s357
      %s359 = smul.addr %s358, 8
      %s360 = scalar_lea.vmem %s1, %s359
      %s361 = smul.u32 %s21, 16
      %s362 = ssub.s32 %s361, 1
      %p363 = scmp.gt.s32.totalorder %s362, 0
      %s364 = scalar_select %p363, %s362, 0
      %s365 = sadd.s32 %s21, 1
      %s366 = smul.u32 %s365, 16
      %p367 = scmp.lt.s32.totalorder %s366, 15
      %s368 = scalar_select %p367, %s366, 15
      %p369 = scmp.lt.s32.totalorder %s20, 1
      %s370 = scalar_select %p369, %s20, 1
      %p371 = scmp.lt.s32.totalorder %s368, 15
      %s372 = scalar_select %p371, %s368, 15
      %s373 = smul.addr %s372, 2
      %s374 = smul.addr %s370, 32
      %s375 = sadd.s32 %s373, %s374
      %s376 = smul.addr %s375, 8
      %s377 = scalar_lea.vmem %s2, %s376
      %s378 = sadd.s32 %s21, 1
      %s379 = smul.u32 %s378, 16
      %p380 = scmp.lt.s32.totalorder %s379, 15
      %s381 = scalar_select %p380, %s379, 15
      %s382 = smul.u32 16, %s21
      %p383 = scmp.lt.s32.totalorder %s20, 1
      %s384 = scalar_select %p383, %s20, 1
      %p385 = scmp.lt.s32.totalorder %s382, 15
      %s386 = scalar_select %p385, %s382, 15
      %s387 = smul.addr %s386, 2
      %s388 = smul.addr %s384, 32
      %s389 = sadd.s32 %s387, %s388
      %s390 = smul.addr %s389, 8
      %s391 = scalar_lea.vmem %s5, %s390
      %s392 = smul.u32 16, %s21
      %v393 = vld [vmem:[%s346] sm:$0xff]
      %v394 = vld [vmem:[%s346 + $0x8] sm:$0xff]
      %v395 = vld [vmem:[%s346 + $0x10] sm:$0xff]
      %v396 = vld [vmem:[%s346 + $0x18] sm:$0xff]
      %v397 = vld [vmem:[%s346 + $0x20] sm:$0xff]
      %v398 = vld [vmem:[%s346 + $0x28] sm:$0xff]
      %v399 = vld [vmem:[%s346 + $0x30] sm:$0xff]
      %v400 = vld [vmem:[%s346 + $0x38] sm:$0xff]
      %v401 = vld [vmem:[%s346 + $0x40] sm:$0xff]
      %v402 = vld [vmem:[%s346 + $0x48] sm:$0xff]
      %v403 = vld [vmem:[%s346 + $0x50] sm:$0xff]
      %v404 = vld [vmem:[%s346 + $0x58] sm:$0xff]
      %v405 = vld [vmem:[%s346 + $0x60] sm:$0xff]
      %v406 = vld [vmem:[%s346 + $0x68] sm:$0xff]
      %v407 = vld [vmem:[%s346 + $0x70] sm:$0xff]
      %v408 = vld [vmem:[%s346 + $0x78] sm:$0xff]
      %v409 = vld [vmem:[%s346 + $0x80] sm:$0xff]
      %v410 = vld [vmem:[%s346 + $0x88] sm:$0xff]
      %v411 = vld [vmem:[%s346 + $0x90] sm:$0xff]
      %v412 = vld [vmem:[%s346 + $0x98] sm:$0xff]
      %v413 = vld [vmem:[%s346 + $0xa0] sm:$0xff]
      %v414 = vld [vmem:[%s346 + $0xa8] sm:$0xff]
      %v415 = vld [vmem:[%s346 + $0xb0] sm:$0xff]
      %v416 = vld [vmem:[%s346 + $0xb8] sm:$0xff]
      %v417 = vld [vmem:[%s346 + $0xc0] sm:$0xff]
      %v418 = vld [vmem:[%s346 + $0xc8] sm:$0xff]
      %v419 = vld [vmem:[%s346 + $0xd0] sm:$0xff]
      %v420 = vld [vmem:[%s346 + $0xd8] sm:$0xff]
      %v421 = vld [vmem:[%s346 + $0xe0] sm:$0xff]
      %v422 = vld [vmem:[%s346 + $0xe8] sm:$0xff]
      %v423 = vld [vmem:[%s346 + $0xf0] sm:$0xff]
      %v424 = vld [vmem:[%s346 + $0xf8] sm:$0xff]
      %v425 = vld [vmem:[%s360] sm:$0xff]
      %v426 = vld [vmem:[%s360 + $0x8] sm:$0xff]
      %v427 = vld [vmem:[%s377] sm:$0xff]
      %v428 = vld [vmem:[%s377 + $0x8] sm:$0xff]
      %p429 = scmp.eq.s32.totalorder %s21, 0
      %s430 = scalar_select %p429, 1, 0
      %v431 = vstv %s430
      %vm432 = vcmp.eq.s32.totalorder %v431, 1
      %v433 = vsel %vm432, 0.0, %v425
      %v434 = vsel %vm432, 0.0, %v426
      %v435 = vsel %vm432, 0.0, %v427
      %v436 = vsel %vm432, 0.0, %v428
      %vm473 = vcmask 1040384
      %v474 = vrot.slane %v433, 7
      %v475 = vrot.slane %v434, 7
      %v476 = vsel %vm473, %v474, %v475
      %v477 = vrot.slane %v393, 7
      %v478 = vrot.slane %v394, 7
      %v479 = vsel %vm473, %v477, %v478
      %v480 = vrot.slane %v395, 7
      %v481 = vrot.slane %v396, 7
      %v482 = vsel %vm473, %v480, %v481
      %v483 = vrot.slane %v397, 7
      %v484 = vrot.slane %v398, 7
      %v485 = vsel %vm473, %v483, %v484
      %v486 = vrot.slane %v399, 7
      %v487 = vrot.slane %v400, 7
      %v488 = vsel %vm473, %v486, %v487
      %v489 = vrot.slane %v401, 7
      %v490 = vrot.slane %v402, 7
      %v491 = vsel %vm473, %v489, %v490
      %v492 = vrot.slane %v403, 7
      %v493 = vrot.slane %v404, 7
      %v494 = vsel %vm473, %v492, %v493
      %v495 = vrot.slane %v405, 7
      %v496 = vrot.slane %v406, 7
      %v497 = vsel %vm473, %v495, %v496
      %v498 = vrot.slane %v407, 7
      %v499 = vrot.slane %v408, 7
      %v500 = vsel %vm473, %v498, %v499
      %v501 = vrot.slane %v409, 7
      %v502 = vrot.slane %v410, 7
      %v503 = vsel %vm473, %v501, %v502
      %v504 = vrot.slane %v411, 7
      %v505 = vrot.slane %v412, 7
      %v506 = vsel %vm473, %v504, %v505
      %v507 = vrot.slane %v413, 7
      %v508 = vrot.slane %v414, 7
      %v509 = vsel %vm473, %v507, %v508
      %v510 = vrot.slane %v415, 7
      %v511 = vrot.slane %v416, 7
      %v512 = vsel %vm473, %v510, %v511
      %v513 = vrot.slane %v417, 7
      %v514 = vrot.slane %v418, 7
      %v515 = vsel %vm473, %v513, %v514
      %v516 = vrot.slane %v419, 7
      %v517 = vrot.slane %v420, 7
      %v518 = vsel %vm473, %v516, %v517
      %v519 = vrot.slane %v421, 7
      %v520 = vrot.slane %v422, 7
      %v521 = vsel %vm473, %v519, %v520
      %v522 = vrot.slane %v423, 7
      %v523 = vrot.slane %v424, 7
      %v524 = vsel %vm473, %v522, %v523
      %v525 = vrot.slane %v435, 7
      %v526 = vrot.slane %v436, 7
      %v527 = vsel %vm473, %v525, %v526
      %v582 = vsel %vm473, 0.0, %v474
      %v583 = vsel %vm473, 0.0, %v477
      %v584 = vsel %vm473, 0.0, %v480
      %v585 = vsel %vm473, 0.0, %v483
      %v586 = vsel %vm473, 0.0, %v486
      %v587 = vsel %vm473, 0.0, %v489
      %v588 = vsel %vm473, 0.0, %v492
      %v589 = vsel %vm473, 0.0, %v495
      %v590 = vsel %vm473, 0.0, %v498
      %v591 = vsel %vm473, 0.0, %v501
      %v592 = vsel %vm473, 0.0, %v504
      %v593 = vsel %vm473, 0.0, %v507
      %v594 = vsel %vm473, 0.0, %v510
      %v595 = vsel %vm473, 0.0, %v513
      %v596 = vsel %vm473, 0.0, %v516
      %v597 = vsel %vm473, 0.0, %v519
      %v598 = vsel %vm473, 0.0, %v522
      %v599 = vsel %vm473, 0.0, %v525
      %v600 = vsel %vm473, %v475, 0.0
      %v601 = vsel %vm473, %v478, 0.0
      %v602 = vsel %vm473, %v481, 0.0
      %v603 = vsel %vm473, %v484, 0.0
      %v604 = vsel %vm473, %v487, 0.0
      %v605 = vsel %vm473, %v490, 0.0
      %v606 = vsel %vm473, %v493, 0.0
      %v607 = vsel %vm473, %v496, 0.0
      %v608 = vsel %vm473, %v499, 0.0
      %v609 = vsel %vm473, %v502, 0.0
      %v610 = vsel %vm473, %v505, 0.0
      %v611 = vsel %vm473, %v508, 0.0
      %v612 = vsel %vm473, %v511, 0.0
      %v613 = vsel %vm473, %v514, 0.0
      %v614 = vsel %vm473, %v517, 0.0
      %v615 = vsel %vm473, %v520, 0.0
      %v616 = vsel %vm473, %v523, 0.0
      %v617 = vsel %vm473, %v526, 0.0
      %vm650 = vcmask 1046528
      %v651 = vrot.slane %v582, 1
      %v652 = vrot.slane %v476, 1
      %v653 = vsel %vm650, %v651, %v652
      %v654 = vrot.slane %v600, 1
      %v655 = vsel %vm650, %v652, %v654
      %v656 = vrot.slane %v583, 1
      %v657 = vrot.slane %v479, 1
      %v658 = vsel %vm650, %v656, %v657
      %v659 = vrot.slane %v601, 1
      %v660 = vsel %vm650, %v657, %v659
      %v661 = vrot.slane %v584, 1
      %v662 = vrot.slane %v482, 1
      %v663 = vsel %vm650, %v661, %v662
      %v664 = vrot.slane %v602, 1
      %v665 = vsel %vm650, %v662, %v664
      %v666 = vrot.slane %v585, 1
      %v667 = vrot.slane %v485, 1
      %v668 = vsel %vm650, %v666, %v667
      %v669 = vrot.slane %v603, 1
      %v670 = vsel %vm650, %v667, %v669
      %v671 = vrot.slane %v586, 1
      %v672 = vrot.slane %v488, 1
      %v673 = vsel %vm650, %v671, %v672
      %v674 = vrot.slane %v604, 1
      %v675 = vsel %vm650, %v672, %v674
      %v676 = vrot.slane %v587, 1
      %v677 = vrot.slane %v491, 1
      %v678 = vsel %vm650, %v676, %v677
      %v679 = vrot.slane %v605, 1
      %v680 = vsel %vm650, %v677, %v679
      %v681 = vrot.slane %v588, 1
      %v682 = vrot.slane %v494, 1
      %v683 = vsel %vm650, %v681, %v682
      %v684 = vrot.slane %v606, 1
      %v685 = vsel %vm650, %v682, %v684
      %v686 = vrot.slane %v589, 1
      %v687 = vrot.slane %v497, 1
      %v688 = vsel %vm650, %v686, %v687
      %v689 = vrot.slane %v607, 1
      %v690 = vsel %vm650, %v687, %v689
      %v691 = vrot.slane %v590, 1
      %v692 = vrot.slane %v500, 1
      %v693 = vsel %vm650, %v691, %v692
      %v694 = vrot.slane %v608, 1
      %v695 = vsel %vm650, %v692, %v694
      %v696 = vrot.slane %v591, 1
      %v697 = vrot.slane %v503, 1
      %v698 = vsel %vm650, %v696, %v697
      %v699 = vrot.slane %v609, 1
      %v700 = vsel %vm650, %v697, %v699
      %v701 = vrot.slane %v592, 1
      %v702 = vrot.slane %v506, 1
      %v703 = vsel %vm650, %v701, %v702
      %v704 = vrot.slane %v610, 1
      %v705 = vsel %vm650, %v702, %v704
      %v706 = vrot.slane %v593, 1
      %v707 = vrot.slane %v509, 1
      %v708 = vsel %vm650, %v706, %v707
      %v709 = vrot.slane %v611, 1
      %v710 = vsel %vm650, %v707, %v709
      %v711 = vrot.slane %v594, 1
      %v712 = vrot.slane %v512, 1
      %v713 = vsel %vm650, %v711, %v712
      %v714 = vrot.slane %v612, 1
      %v715 = vsel %vm650, %v712, %v714
      %v716 = vrot.slane %v595, 1
      %v717 = vrot.slane %v515, 1
      %v718 = vsel %vm650, %v716, %v717
      %v719 = vrot.slane %v613, 1
      %v720 = vsel %vm650, %v717, %v719
      %v721 = vrot.slane %v596, 1
      %v722 = vrot.slane %v518, 1
      %v723 = vsel %vm650, %v721, %v722
      %v724 = vrot.slane %v614, 1
      %v725 = vsel %vm650, %v722, %v724
      %v726 = vrot.slane %v597, 1
      %v727 = vrot.slane %v521, 1
      %v728 = vsel %vm650, %v726, %v727
      %v729 = vrot.slane %v615, 1
      %v730 = vsel %vm650, %v727, %v729
      %731 = vrot.lane.b32.xlu0 %v653, 4
      %v732 = vpop.permute.xlu0 %731
      %733 = vrot.lane.b32.xlu0 %v655, 4
      %v734 = vpop.permute.xlu0 %733
      %735 = vrot.lane.b32.xlu0 %v658, 4
      %v736 = vpop.permute.xlu0 %735
      %737 = vrot.lane.b32.xlu0 %v660, 4
      %v738 = vpop.permute.xlu0 %737
      %739 = vrot.lane.b32.xlu0 %v663, 4
      %v740 = vpop.permute.xlu0 %739
      %741 = vrot.lane.b32.xlu0 %v665, 4
      %v742 = vpop.permute.xlu0 %741
      %743 = vrot.lane.b32.xlu0 %v668, 4
      %v744 = vpop.permute.xlu0 %743
      %745 = vrot.lane.b32.xlu0 %v670, 4
      %v746 = vpop.permute.xlu0 %745
      %747 = vrot.lane.b32.xlu0 %v673, 4
      %v748 = vpop.permute.xlu0 %747
      %749 = vrot.lane.b32.xlu0 %v675, 4
      %v750 = vpop.permute.xlu0 %749
      %751 = vrot.lane.b32.xlu0 %v678, 4
      %v752 = vpop.permute.xlu0 %751
      %753 = vrot.lane.b32.xlu0 %v680, 4
      %v754 = vpop.permute.xlu0 %753
      %755 = vrot.lane.b32.xlu0 %v683, 4
      %v756 = vpop.permute.xlu0 %755
      %757 = vrot.lane.b32.xlu0 %v685, 4
      %v758 = vpop.permute.xlu0 %757
      %759 = vrot.lane.b32.xlu0 %v688, 4
      %v760 = vpop.permute.xlu0 %759
      %761 = vrot.lane.b32.xlu0 %v690, 4
      %v762 = vpop.permute.xlu0 %761
      %763 = vrot.lane.b32.xlu0 %v693, 4
      %v764 = vpop.permute.xlu0 %763
      %765 = vrot.lane.b32.xlu0 %v695, 4
      %v766 = vpop.permute.xlu0 %765
      %767 = vrot.lane.b32.xlu0 %v698, 4
      %v768 = vpop.permute.xlu0 %767
      %769 = vrot.lane.b32.xlu0 %v700, 4
      %v770 = vpop.permute.xlu0 %769
      %771 = vrot.lane.b32.xlu0 %v703, 4
      %v772 = vpop.permute.xlu0 %771
      %773 = vrot.lane.b32.xlu0 %v705, 4
      %v774 = vpop.permute.xlu0 %773
      %775 = vrot.lane.b32.xlu0 %v708, 4
      %v776 = vpop.permute.xlu0 %775
      %777 = vrot.lane.b32.xlu0 %v710, 4
      %v778 = vpop.permute.xlu0 %777
      %779 = vrot.lane.b32.xlu0 %v713, 4
      %v780 = vpop.permute.xlu0 %779
      %781 = vrot.lane.b32.xlu0 %v715, 4
      %v782 = vpop.permute.xlu0 %781
      %783 = vrot.lane.b32.xlu0 %v718, 4
      %v784 = vpop.permute.xlu0 %783
      %785 = vrot.lane.b32.xlu0 %v720, 4
      %v786 = vpop.permute.xlu0 %785
      %787 = vrot.lane.b32.xlu0 %v723, 4
      %v788 = vpop.permute.xlu0 %787
      %789 = vrot.lane.b32.xlu0 %v725, 4
      %v790 = vpop.permute.xlu0 %789
      %791 = vrot.lane.b32.xlu0 %v728, 4
      %v792 = vpop.permute.xlu0 %791
      %793 = vrot.lane.b32.xlu0 %v730, 4
      %v794 = vpop.permute.xlu0 %793
      %vm827 = vcmask 1045504
      %v828 = vrot.slane %v582, 2
      %v829 = vrot.slane %v476, 2
      %v830 = vsel %vm827, %v828, %v829
      %v831 = vrot.slane %v600, 2
      %v832 = vsel %vm827, %v829, %v831
      %v833 = vrot.slane %v583, 2
      %v834 = vrot.slane %v479, 2
      %v835 = vsel %vm827, %v833, %v834
      %v836 = vrot.slane %v601, 2
      %v837 = vsel %vm827, %v834, %v836
      %v838 = vrot.slane %v584, 2
      %v839 = vrot.slane %v482, 2
      %v840 = vsel %vm827, %v838, %v839
      %v841 = vrot.slane %v602, 2
      %v842 = vsel %vm827, %v839, %v841
      %v843 = vrot.slane %v585, 2
      %v844 = vrot.slane %v485, 2
      %v845 = vsel %vm827, %v843, %v844
      %v846 = vrot.slane %v603, 2
      %v847 = vsel %vm827, %v844, %v846
      %v848 = vrot.slane %v586, 2
      %v849 = vrot.slane %v488, 2
      %v850 = vsel %vm827, %v848, %v849
      %v851 = vrot.slane %v604, 2
      %v852 = vsel %vm827, %v849, %v851
      %v853 = vrot.slane %v587, 2
      %v854 = vrot.slane %v491, 2
      %v855 = vsel %vm827, %v853, %v854
      %v856 = vrot.slane %v605, 2
      %v857 = vsel %vm827, %v854, %v856
      %v858 = vrot.slane %v588, 2
      %v859 = vrot.slane %v494, 2
      %v860 = vsel %vm827, %v858, %v859
      %v861 = vrot.slane %v606, 2
      %v862 = vsel %vm827, %v859, %v861
      %v863 = vrot.slane %v589, 2
      %v864 = vrot.slane %v497, 2
      %v865 = vsel %vm827, %v863, %v864
      %v866 = vrot.slane %v607, 2
      %v867 = vsel %vm827, %v864, %v866
      %v868 = vrot.slane %v590, 2
      %v869 = vrot.slane %v500, 2
      %v870 = vsel %vm827, %v868, %v869
      %v871 = vrot.slane %v608, 2
      %v872 = vsel %vm827, %v869, %v871
      %v873 = vrot.slane %v591, 2
      %v874 = vrot.slane %v503, 2
      %v875 = vsel %vm827, %v873, %v874
      %v876 = vrot.slane %v609, 2
      %v877 = vsel %vm827, %v874, %v876
      %v878 = vrot.slane %v592, 2
      %v879 = vrot.slane %v506, 2
      %v880 = vsel %vm827, %v878, %v879
      %v881 = vrot.slane %v610, 2
      %v882 = vsel %vm827, %v879, %v881
      %v883 = vrot.slane %v593, 2
      %v884 = vrot.slane %v509, 2
      %v885 = vsel %vm827, %v883, %v884
      %v886 = vrot.slane %v611, 2
      %v887 = vsel %vm827, %v884, %v886
      %v888 = vrot.slane %v594, 2
      %v889 = vrot.slane %v512, 2
      %v890 = vsel %vm827, %v888, %v889
      %v891 = vrot.slane %v612, 2
      %v892 = vsel %vm827, %v889, %v891
      %v893 = vrot.slane %v595, 2
      %v894 = vrot.slane %v515, 2
      %v895 = vsel %vm827, %v893, %v894
      %v896 = vrot.slane %v613, 2
      %v897 = vsel %vm827, %v894, %v896
      %v898 = vrot.slane %v596, 2
      %v899 = vrot.slane %v518, 2
      %v900 = vsel %vm827, %v898, %v899
      %v901 = vrot.slane %v614, 2
      %v902 = vsel %vm827, %v899, %v901
      %v903 = vrot.slane %v597, 2
      %v904 = vrot.slane %v521, 2
      %v905 = vsel %vm827, %v903, %v904
      %v906 = vrot.slane %v615, 2
      %v907 = vsel %vm827, %v904, %v906
      %908 = vrot.lane.b32.xlu0 %v830, 8
      %v909 = vpop.permute.xlu0 %908
      %910 = vrot.lane.b32.xlu0 %v832, 8
      %v911 = vpop.permute.xlu0 %910
      %912 = vrot.lane.b32.xlu0 %v835, 8
      %v913 = vpop.permute.xlu0 %912
      %914 = vrot.lane.b32.xlu0 %v837, 8
      %v915 = vpop.permute.xlu0 %914
      %916 = vrot.lane.b32.xlu0 %v840, 8
      %v917 = vpop.permute.xlu0 %916
      %918 = vrot.lane.b32.xlu0 %v842, 8
      %v919 = vpop.permute.xlu0 %918
      %920 = vrot.lane.b32.xlu0 %v845, 8
      %v921 = vpop.permute.xlu0 %920
      %922 = vrot.lane.b32.xlu0 %v847, 8
      %v923 = vpop.permute.xlu0 %922
      %924 = vrot.lane.b32.xlu0 %v850, 8
      %v925 = vpop.permute.xlu0 %924
      %926 = vrot.lane.b32.xlu0 %v852, 8
      %v927 = vpop.permute.xlu0 %926
      %928 = vrot.lane.b32.xlu0 %v855, 8
      %v929 = vpop.permute.xlu0 %928
      %930 = vrot.lane.b32.xlu0 %v857, 8
      %v931 = vpop.permute.xlu0 %930
      %932 = vrot.lane.b32.xlu0 %v860, 8
      %v933 = vpop.permute.xlu0 %932
      %934 = vrot.lane.b32.xlu0 %v862, 8
      %v935 = vpop.permute.xlu0 %934
      %936 = vrot.lane.b32.xlu0 %v865, 8
      %v937 = vpop.permute.xlu0 %936
      %938 = vrot.lane.b32.xlu0 %v867, 8
      %v939 = vpop.permute.xlu0 %938
      %940 = vrot.lane.b32.xlu0 %v870, 8
      %v941 = vpop.permute.xlu0 %940
      %942 = vrot.lane.b32.xlu0 %v872, 8
      %v943 = vpop.permute.xlu0 %942
      %944 = vrot.lane.b32.xlu0 %v875, 8
      %v945 = vpop.permute.xlu0 %944
      %946 = vrot.lane.b32.xlu0 %v877, 8
      %v947 = vpop.permute.xlu0 %946
      %948 = vrot.lane.b32.xlu0 %v880, 8
      %v949 = vpop.permute.xlu0 %948
      %950 = vrot.lane.b32.xlu0 %v882, 8
      %v951 = vpop.permute.xlu0 %950
      %952 = vrot.lane.b32.xlu0 %v885, 8
      %v953 = vpop.permute.xlu0 %952
      %954 = vrot.lane.b32.xlu0 %v887, 8
      %v955 = vpop.permute.xlu0 %954
      %956 = vrot.lane.b32.xlu0 %v890, 8
      %v957 = vpop.permute.xlu0 %956
      %958 = vrot.lane.b32.xlu0 %v892, 8
      %v959 = vpop.permute.xlu0 %958
      %960 = vrot.lane.b32.xlu0 %v895, 8
      %v961 = vpop.permute.xlu0 %960
      %962 = vrot.lane.b32.xlu0 %v897, 8
      %v963 = vpop.permute.xlu0 %962
      %964 = vrot.lane.b32.xlu0 %v900, 8
      %v965 = vpop.permute.xlu0 %964
      %966 = vrot.lane.b32.xlu0 %v902, 8
      %v967 = vpop.permute.xlu0 %966
      %968 = vrot.lane.b32.xlu0 %v905, 8
      %v969 = vpop.permute.xlu0 %968
      %970 = vrot.lane.b32.xlu0 %v907, 8
      %v971 = vpop.permute.xlu0 %970
      %vm1004 = vcmask 31744
      %v1005 = vsel %vm1004, %v582, %v732
      %v1006 = vsel %vm1004, %v476, %v734
      %v1007 = vsel %vm1004, %v583, %v736
      %v1008 = vsel %vm1004, %v479, %v738
      %v1009 = vsel %vm1004, %v584, %v740
      %v1010 = vsel %vm1004, %v482, %v742
      %v1011 = vsel %vm1004, %v585, %v744
      %v1012 = vsel %vm1004, %v485, %v746
      %v1013 = vsel %vm1004, %v586, %v748
      %v1014 = vsel %vm1004, %v488, %v750
      %v1015 = vsel %vm1004, %v587, %v752
      %v1016 = vsel %vm1004, %v491, %v754
      %v1017 = vsel %vm1004, %v588, %v756
      %v1018 = vsel %vm1004, %v494, %v758
      %v1019 = vsel %vm1004, %v589, %v760
      %v1020 = vsel %vm1004, %v497, %v762
      %v1021 = vsel %vm1004, %v590, %v764
      %v1022 = vsel %vm1004, %v500, %v766
      %v1023 = vsel %vm1004, %v591, %v768
      %v1024 = vsel %vm1004, %v503, %v770
      %v1025 = vsel %vm1004, %v592, %v772
      %v1026 = vsel %vm1004, %v506, %v774
      %v1027 = vsel %vm1004, %v593, %v776
      %v1028 = vsel %vm1004, %v509, %v778
      %v1029 = vsel %vm1004, %v594, %v780
      %v1030 = vsel %vm1004, %v512, %v782
      %v1031 = vsel %vm1004, %v595, %v784
      %v1032 = vsel %vm1004, %v515, %v786
      %v1033 = vsel %vm1004, %v596, %v788
      %v1034 = vsel %vm1004, %v518, %v790
      %v1035 = vsel %vm1004, %v597, %v792
      %v1036 = vsel %vm1004, %v521, %v794
      %vm1037 = vcmask 64512
      %v1038 = vsel %vm1037, %v1005, %v909
      %v1039 = vsel %vm1037, %v1006, %v911
      %v1040 = vsel %vm1037, %v1007, %v913
      %v1041 = vsel %vm1037, %v1008, %v915
      %v1042 = vsel %vm1037, %v1009, %v917
      %v1043 = vsel %vm1037, %v1010, %v919
      %v1044 = vsel %vm1037, %v1011, %v921
      %v1045 = vsel %vm1037, %v1012, %v923
      %v1046 = vsel %vm1037, %v1013, %v925
      %v1047 = vsel %vm1037, %v1014, %v927
      %v1048 = vsel %vm1037, %v1015, %v929
      %v1049 = vsel %vm1037, %v1016, %v931
      %v1050 = vsel %vm1037, %v1017, %v933
      %v1051 = vsel %vm1037, %v1018, %v935
      %v1052 = vsel %vm1037, %v1019, %v937
      %v1053 = vsel %vm1037, %v1020, %v939
      %v1054 = vsel %vm1037, %v1021, %v941
      %v1055 = vsel %vm1037, %v1022, %v943
      %v1056 = vsel %vm1037, %v1023, %v945
      %v1057 = vsel %vm1037, %v1024, %v947
      %v1058 = vsel %vm1037, %v1025, %v949
      %v1059 = vsel %vm1037, %v1026, %v951
      %v1060 = vsel %vm1037, %v1027, %v953
      %v1061 = vsel %vm1037, %v1028, %v955
      %v1062 = vsel %vm1037, %v1029, %v957
      %v1063 = vsel %vm1037, %v1030, %v959
      %v1064 = vsel %vm1037, %v1031, %v961
      %v1065 = vsel %vm1037, %v1032, %v963
      %v1066 = vsel %vm1037, %v1033, %v965
      %v1067 = vsel %vm1037, %v1034, %v967
      %v1068 = vsel %vm1037, %v1035, %v969
      %v1069 = vsel %vm1037, %v1036, %v971
      %v1070 = vld [vmem:[%s3] sm:$0xff]
      %v1071 = vld [vmem:[%s3 + $0x8] sm:$0xf]
      %v1074 = vrot.slane %v598, 1
      %v1075 = vrot.slane %v524, 1
      %v1076 = vsel %vm650, %v1074, %v1075
      %v1077 = vrot.slane %v616, 1
      %v1078 = vsel %vm650, %v1075, %v1077
      %1079 = vrot.lane.b32.xlu0 %v1076, 4
      %v1080 = vpop.permute.xlu0 %1079
      %1081 = vrot.lane.b32.xlu0 %v1078, 4
      %v1082 = vpop.permute.xlu0 %1081
      %v1085 = vrot.slane %v598, 2
      %v1086 = vrot.slane %v524, 2
      %v1087 = vsel %vm827, %v1085, %v1086
      %v1088 = vrot.slane %v616, 2
      %v1089 = vsel %vm827, %v1086, %v1088
      %1090 = vrot.lane.b32.xlu0 %v1087, 8
      %v1091 = vpop.permute.xlu0 %1090
      %1092 = vrot.lane.b32.xlu0 %v1089, 8
      %v1093 = vpop.permute.xlu0 %1092
      %v1096 = vsel %vm1004, %v598, %v1080
      %v1097 = vsel %vm1004, %v524, %v1082
      %v1098 = vsel %vm1037, %v1096, %v1091
      %v1099 = vsel %vm1037, %v1097, %v1093
      %s1100 = scalar_lea.vmem %s3, 16
      %v1101 = vld [vmem:[%s1100] sm:$0xff]
      %v1102 = vld [vmem:[%s1100 + $0x8] sm:$0xf]
      %vm1103 = vcmask 97280
      %v1105 = vsel %vm1103, %v1040, 0
      %v1108 = vsel %vm1103, %v1041, 0
      %v1111 = vsel %vm1103, %v1042, 0
      %v1114 = vsel %vm1103, %v1043, 0
      %v1117 = vsel %vm1103, %v1044, 0
      %v1120 = vsel %vm1103, %v1045, 0
      %v1123 = vsel %vm1103, %v1046, 0
      %v1126 = vsel %vm1103, %v1047, 0
      %v1129 = vsel %vm1103, %v1048, 0
      %v1132 = vsel %vm1103, %v1049, 0
      %v1135 = vsel %vm1103, %v1050, 0
      %v1138 = vsel %vm1103, %v1051, 0
      %v1141 = vsel %vm1103, %v1052, 0
      %v1144 = vsel %vm1103, %v1053, 0
      %v1147 = vsel %vm1103, %v1054, 0
      %v1150 = vsel %vm1103, %v1055, 0
      %v1153 = vsel %vm1103, %v1056, 0
      %v1156 = vsel %vm1103, %v1057, 0
      %v1159 = vsel %vm1103, %v1058, 0
      %v1162 = vsel %vm1103, %v1059, 0
      %v1165 = vsel %vm1103, %v1060, 0
      %v1168 = vsel %vm1103, %v1061, 0
      %v1171 = vsel %vm1103, %v1062, 0
      %v1174 = vsel %vm1103, %v1063, 0
      %v1177 = vsel %vm1103, %v1064, 0
      %v1180 = vsel %vm1103, %v1065, 0
      %v1183 = vsel %vm1103, %v1066, 0
      %v1186 = vsel %vm1103, %v1067, 0
      %v1189 = vsel %vm1103, %v1068, 0
      %v1192 = vsel %vm1103, %v1069, 0
      %v1195 = vsel %vm1103, %v1098, 0
      %v1198 = vsel %vm1103, %v1099, 0
      %vm1200 = vcmask 1043456
      %v1202 = vsel %vm1200, %v1102, 0
      %1204 = vmatpush.msra.mxu0 0.0
      %1205 = vmatpush.msra.mxu0 0.0
      %1206 = vmatpush.msra.mxu0 0.0
      %1207 = vmatpush.msra.mxu0 0.0
      %1208 = vmatpush.msra.mxu0 0.0
      %1209 = vmatpush.msra.mxu0 0.0
      %1210 = vmatpush.msra.mxu0 0.0
      %1211 = vmatpush.msra.mxu0 0.0
      %1212 = vmatpush.msra.mxu0 0.0
      %1213 = vmatpush.msra.mxu0 0.0
      %1214 = vmatpush.msra.mxu0 0.0
      %1215 = vmatpush.msra.mxu0 0.0
      %1216 = vmatpush.msra.mxu0 0.0
      %1217 = vmatpush.msra.mxu0 0.0
      %1218 = vmatpush.msra.mxu0 %v1202
      %1219 = vmatpush.msra.mxu0 %v1101
      %1220 = vmatmul.f32.gmra.mxu0 %v1105
      %v1221 = vpop.f32.mrf.mxu0
      %v1222 = vadd.f32 0.0, %v1221
      %1223 = vmatmul.f32.gmra.mxu0 %v1108
      %v1224 = vpop.f32.mrf.mxu0
      %v1225 = vadd.f32 0.0, %v1224
      %1226 = vmatmul.f32.gmra.mxu0 %v1111
      %v1227 = vpop.f32.mrf.mxu0
      %v1228 = vadd.f32 0.0, %v1227
      %1229 = vmatmul.f32.gmra.mxu0 %v1114
      %v1230 = vpop.f32.mrf.mxu0
      %v1231 = vadd.f32 0.0, %v1230
      %1232 = vmatmul.f32.gmra.mxu0 %v1117
      %v1233 = vpop.f32.mrf.mxu0
      %v1234 = vadd.f32 0.0, %v1233
      %1235 = vmatmul.f32.gmra.mxu0 %v1120
      %v1236 = vpop.f32.mrf.mxu0
      %v1237 = vadd.f32 0.0, %v1236
      %1238 = vmatmul.f32.gmra.mxu0 %v1123
      %v1239 = vpop.f32.mrf.mxu0
      %v1240 = vadd.f32 0.0, %v1239
      %1241 = vmatmul.f32.gmra.mxu0 %v1126
      %v1242 = vpop.f32.mrf.mxu0
      %v1243 = vadd.f32 0.0, %v1242
      %1244 = vmatmul.f32.gmra.mxu0 %v1129
      %v1245 = vpop.f32.mrf.mxu0
      %v1246 = vadd.f32 0.0, %v1245
      %1247 = vmatmul.f32.gmra.mxu0 %v1132
      %v1248 = vpop.f32.mrf.mxu0
      %v1249 = vadd.f32 0.0, %v1248
      %1250 = vmatmul.f32.gmra.mxu0 %v1135
      %v1251 = vpop.f32.mrf.mxu0
      %v1252 = vadd.f32 0.0, %v1251
      %1253 = vmatmul.f32.gmra.mxu0 %v1138
      %v1254 = vpop.f32.mrf.mxu0
      %v1255 = vadd.f32 0.0, %v1254
      %1256 = vmatmul.f32.gmra.mxu0 %v1141
      %v1257 = vpop.f32.mrf.mxu0
      %v1258 = vadd.f32 0.0, %v1257
      %1259 = vmatmul.f32.gmra.mxu0 %v1144
      %v1260 = vpop.f32.mrf.mxu0
      %v1261 = vadd.f32 0.0, %v1260
      %1262 = vmatmul.f32.gmra.mxu0 %v1147
      %v1263 = vpop.f32.mrf.mxu0
      %v1264 = vadd.f32 0.0, %v1263
      %1265 = vmatmul.f32.gmra.mxu0 %v1150
      %v1266 = vpop.f32.mrf.mxu0
      %v1267 = vadd.f32 0.0, %v1266
      %1268 = vmatmul.f32.gmra.mxu0 %v1153
      %v1269 = vpop.f32.mrf.mxu0
      %v1270 = vadd.f32 0.0, %v1269
      %1271 = vmatmul.f32.gmra.mxu0 %v1156
      %v1272 = vpop.f32.mrf.mxu0
      %v1273 = vadd.f32 0.0, %v1272
      %1274 = vmatmul.f32.gmra.mxu0 %v1159
      %v1275 = vpop.f32.mrf.mxu0
      %v1276 = vadd.f32 0.0, %v1275
      %1277 = vmatmul.f32.gmra.mxu0 %v1162
      %v1278 = vpop.f32.mrf.mxu0
      %v1279 = vadd.f32 0.0, %v1278
      %1280 = vmatmul.f32.gmra.mxu0 %v1165
      %v1281 = vpop.f32.mrf.mxu0
      %v1282 = vadd.f32 0.0, %v1281
      %1283 = vmatmul.f32.gmra.mxu0 %v1168
      %v1284 = vpop.f32.mrf.mxu0
      %v1285 = vadd.f32 0.0, %v1284
      %1286 = vmatmul.f32.gmra.mxu0 %v1171
      %v1287 = vpop.f32.mrf.mxu0
      %v1288 = vadd.f32 0.0, %v1287
      %1289 = vmatmul.f32.gmra.mxu0 %v1174
      %v1290 = vpop.f32.mrf.mxu0
      %v1291 = vadd.f32 0.0, %v1290
      %1292 = vmatmul.f32.gmra.mxu0 %v1177
      %v1293 = vpop.f32.mrf.mxu0
      %v1294 = vadd.f32 0.0, %v1293
      %1295 = vmatmul.f32.gmra.mxu0 %v1180
      %v1296 = vpop.f32.mrf.mxu0
      %v1297 = vadd.f32 0.0, %v1296
      %1298 = vmatmul.f32.gmra.mxu0 %v1183
      %v1299 = vpop.f32.mrf.mxu0
      %v1300 = vadd.f32 0.0, %v1299
      %1301 = vmatmul.f32.gmra.mxu0 %v1186
      %v1302 = vpop.f32.mrf.mxu0
      %v1303 = vadd.f32 0.0, %v1302
      %1304 = vmatmul.f32.gmra.mxu0 %v1189
      %v1305 = vpop.f32.mrf.mxu0
      %v1306 = vadd.f32 0.0, %v1305
      %1307 = vmatmul.f32.gmra.mxu0 %v1192
      %v1308 = vpop.f32.mrf.mxu0
      %v1309 = vadd.f32 0.0, %v1308
      %1310 = vmatmul.f32.gmra.mxu0 %v1195
      %v1311 = vpop.f32.mrf.mxu0
      %v1312 = vadd.f32 0.0, %v1311
      %1313 = vmatmul.f32.gmra.mxu0 %v1198
      %v1314 = vpop.f32.mrf.mxu0
      %v1315 = vadd.f32 0.0, %v1314
      %1316 = vdwg.mxu0
      %v1318 = vsel %vm1103, %v1038, 0
      %v1321 = vsel %vm1103, %v1039, 0
      %v1324 = vsel %vm1200, %v1071, 0
      %1326 = vmatpush.msra.mxu0 0.0
      %1327 = vmatpush.msra.mxu0 0.0
      %1328 = vmatpush.msra.mxu0 0.0
      %1329 = vmatpush.msra.mxu0 0.0
      %1330 = vmatpush.msra.mxu0 0.0
      %1331 = vmatpush.msra.mxu0 0.0
      %1332 = vmatpush.msra.mxu0 0.0
      %1333 = vmatpush.msra.mxu0 0.0
      %1334 = vmatpush.msra.mxu0 0.0
      %1335 = vmatpush.msra.mxu0 0.0
      %1336 = vmatpush.msra.mxu0 0.0
      %1337 = vmatpush.msra.mxu0 0.0
      %1338 = vmatpush.msra.mxu0 0.0
      %1339 = vmatpush.msra.mxu0 0.0
      %1340 = vmatpush.msra.mxu0 %v1324
      %1341 = vmatpush.msra.mxu0 %v1070
      %1342 = vmatmul.f32.gmra.mxu0 %v1318
      %v1343 = vpop.f32.mrf.mxu0
      %v1344 = vadd.f32 %v1222, %v1343
      %1345 = vmatmul.f32.gmra.mxu0 %v1321
      %v1346 = vpop.f32.mrf.mxu0
      %v1347 = vadd.f32 %v1225, %v1346
      %1348 = vmatmul.f32.gmra.mxu0 %v1105
      %v1349 = vpop.f32.mrf.mxu0
      %v1350 = vadd.f32 %v1228, %v1349
      %1351 = vmatmul.f32.gmra.mxu0 %v1108
      %v1352 = vpop.f32.mrf.mxu0
      %v1353 = vadd.f32 %v1231, %v1352
      %1354 = vmatmul.f32.gmra.mxu0 %v1111
      %v1355 = vpop.f32.mrf.mxu0
      %v1356 = vadd.f32 %v1234, %v1355
      %1357 = vmatmul.f32.gmra.mxu0 %v1114
      %v1358 = vpop.f32.mrf.mxu0
      %v1359 = vadd.f32 %v1237, %v1358
      %1360 = vmatmul.f32.gmra.mxu0 %v1117
      %v1361 = vpop.f32.mrf.mxu0
      %v1362 = vadd.f32 %v1240, %v1361
      %1363 = vmatmul.f32.gmra.mxu0 %v1120
      %v1364 = vpop.f32.mrf.mxu0
      %v1365 = vadd.f32 %v1243, %v1364
      %1366 = vmatmul.f32.gmra.mxu0 %v1123
      %v1367 = vpop.f32.mrf.mxu0
      %v1368 = vadd.f32 %v1246, %v1367
      %1369 = vmatmul.f32.gmra.mxu0 %v1126
      %v1370 = vpop.f32.mrf.mxu0
      %v1371 = vadd.f32 %v1249, %v1370
      %1372 = vmatmul.f32.gmra.mxu0 %v1129
      %v1373 = vpop.f32.mrf.mxu0
      %v1374 = vadd.f32 %v1252, %v1373
      %1375 = vmatmul.f32.gmra.mxu0 %v1132
      %v1376 = vpop.f32.mrf.mxu0
      %v1377 = vadd.f32 %v1255, %v1376
      %1378 = vmatmul.f32.gmra.mxu0 %v1135
      %v1379 = vpop.f32.mrf.mxu0
      %v1380 = vadd.f32 %v1258, %v1379
      %1381 = vmatmul.f32.gmra.mxu0 %v1138
      %v1382 = vpop.f32.mrf.mxu0
      %v1383 = vadd.f32 %v1261, %v1382
      %1384 = vmatmul.f32.gmra.mxu0 %v1141
      %v1385 = vpop.f32.mrf.mxu0
      %v1386 = vadd.f32 %v1264, %v1385
      %1387 = vmatmul.f32.gmra.mxu0 %v1144
      %v1388 = vpop.f32.mrf.mxu0
      %v1389 = vadd.f32 %v1267, %v1388
      %1390 = vmatmul.f32.gmra.mxu0 %v1147
      %v1391 = vpop.f32.mrf.mxu0
      %v1392 = vadd.f32 %v1270, %v1391
      %1393 = vmatmul.f32.gmra.mxu0 %v1150
      %v1394 = vpop.f32.mrf.mxu0
      %v1395 = vadd.f32 %v1273, %v1394
      %1396 = vmatmul.f32.gmra.mxu0 %v1153
      %v1397 = vpop.f32.mrf.mxu0
      %v1398 = vadd.f32 %v1276, %v1397
      %1399 = vmatmul.f32.gmra.mxu0 %v1156
      %v1400 = vpop.f32.mrf.mxu0
      %v1401 = vadd.f32 %v1279, %v1400
      %1402 = vmatmul.f32.gmra.mxu0 %v1159
      %v1403 = vpop.f32.mrf.mxu0
      %v1404 = vadd.f32 %v1282, %v1403
      %1405 = vmatmul.f32.gmra.mxu0 %v1162
      %v1406 = vpop.f32.mrf.mxu0
      %v1407 = vadd.f32 %v1285, %v1406
      %1408 = vmatmul.f32.gmra.mxu0 %v1165
      %v1409 = vpop.f32.mrf.mxu0
      %v1410 = vadd.f32 %v1288, %v1409
      %1411 = vmatmul.f32.gmra.mxu0 %v1168
      %v1412 = vpop.f32.mrf.mxu0
      %v1413 = vadd.f32 %v1291, %v1412
      %1414 = vmatmul.f32.gmra.mxu0 %v1171
      %v1415 = vpop.f32.mrf.mxu0
      %v1416 = vadd.f32 %v1294, %v1415
      %1417 = vmatmul.f32.gmra.mxu0 %v1174
      %v1418 = vpop.f32.mrf.mxu0
      %v1419 = vadd.f32 %v1297, %v1418
      %1420 = vmatmul.f32.gmra.mxu0 %v1177
      %v1421 = vpop.f32.mrf.mxu0
      %v1422 = vadd.f32 %v1300, %v1421
      %1423 = vmatmul.f32.gmra.mxu0 %v1180
      %v1424 = vpop.f32.mrf.mxu0
      %v1425 = vadd.f32 %v1303, %v1424
      %1426 = vmatmul.f32.gmra.mxu0 %v1183
      %v1427 = vpop.f32.mrf.mxu0
      %v1428 = vadd.f32 %v1306, %v1427
      %1429 = vmatmul.f32.gmra.mxu0 %v1186
      %v1430 = vpop.f32.mrf.mxu0
      %v1431 = vadd.f32 %v1309, %v1430
      %1432 = vmatmul.f32.gmra.mxu0 %v1189
      %v1433 = vpop.f32.mrf.mxu0
      %v1434 = vadd.f32 %v1312, %v1433
      %1435 = vmatmul.f32.gmra.mxu0 %v1192
      %v1436 = vpop.f32.mrf.mxu0
      %v1437 = vadd.f32 %v1315, %v1436
      %1438 = vdwg.mxu0
      %v1441 = vrot.slane %v599, 1
      %v1442 = vrot.slane %v527, 1
      %v1443 = vsel %vm650, %v1441, %v1442
      %v1444 = vrot.slane %v617, 1
      %v1445 = vsel %vm650, %v1442, %v1444
      %1446 = vrot.lane.b32.xlu0 %v1443, 4
      %v1447 = vpop.permute.xlu0 %1446
      %1448 = vrot.lane.b32.xlu0 %v1445, 4
      %v1449 = vpop.permute.xlu0 %1448
      %v1452 = vrot.slane %v599, 2
      %v1453 = vrot.slane %v527, 2
      %v1454 = vsel %vm827, %v1452, %v1453
      %v1455 = vrot.slane %v617, 2
      %v1456 = vsel %vm827, %v1453, %v1455
      %1457 = vrot.lane.b32.xlu0 %v1454, 8
      %v1458 = vpop.permute.xlu0 %1457
      %1459 = vrot.lane.b32.xlu0 %v1456, 8
      %v1460 = vpop.permute.xlu0 %1459
      %v1463 = vsel %vm1004, %v599, %v1447
      %v1464 = vsel %vm1004, %v527, %v1449
      %v1465 = vsel %vm1037, %v1463, %v1458
      %v1466 = vsel %vm1037, %v1464, %v1460
      %s1467 = scalar_lea.vmem %s3, 32
      %v1468 = vld [vmem:[%s1467] sm:$0xff]
      %v1469 = vld [vmem:[%s1467 + $0x8] sm:$0xf]
      %v1471 = vsel %vm1103, %v1465, 0
      %v1474 = vsel %vm1103, %v1466, 0
      %v1477 = vsel %vm1200, %v1469, 0
      %1479 = vmatpush.msra.mxu0 0.0
      %1480 = vmatpush.msra.mxu0 0.0
      %1481 = vmatpush.msra.mxu0 0.0
      %1482 = vmatpush.msra.mxu0 0.0
      %1483 = vmatpush.msra.mxu0 0.0
      %1484 = vmatpush.msra.mxu0 0.0
      %1485 = vmatpush.msra.mxu0 0.0
      %1486 = vmatpush.msra.mxu0 0.0
      %1487 = vmatpush.msra.mxu0 0.0
      %1488 = vmatpush.msra.mxu0 0.0
      %1489 = vmatpush.msra.mxu0 0.0
      %1490 = vmatpush.msra.mxu0 0.0
      %1491 = vmatpush.msra.mxu0 0.0
      %1492 = vmatpush.msra.mxu0 0.0
      %1493 = vmatpush.msra.mxu0 %v1477
      %1494 = vmatpush.msra.mxu0 %v1468
      %1495 = vmatmul.f32.gmra.mxu0 %v1111
      %v1496 = vpop.f32.mrf.mxu0
      %v1497 = vadd.f32 0.0, %v1496
      %1498 = vmatmul.f32.gmra.mxu0 %v1114
      %v1499 = vpop.f32.mrf.mxu0
      %v1500 = vadd.f32 0.0, %v1499
      %1501 = vmatmul.f32.gmra.mxu0 %v1117
      %v1502 = vpop.f32.mrf.mxu0
      %v1503 = vadd.f32 0.0, %v1502
      %1504 = vmatmul.f32.gmra.mxu0 %v1120
      %v1505 = vpop.f32.mrf.mxu0
      %v1506 = vadd.f32 0.0, %v1505
      %1507 = vmatmul.f32.gmra.mxu0 %v1123
      %v1508 = vpop.f32.mrf.mxu0
      %v1509 = vadd.f32 0.0, %v1508
      %1510 = vmatmul.f32.gmra.mxu0 %v1126
      %v1511 = vpop.f32.mrf.mxu0
      %v1512 = vadd.f32 0.0, %v1511
      %1513 = vmatmul.f32.gmra.mxu0 %v1129
      %v1514 = vpop.f32.mrf.mxu0
      %v1515 = vadd.f32 0.0, %v1514
      %1516 = vmatmul.f32.gmra.mxu0 %v1132
      %v1517 = vpop.f32.mrf.mxu0
      %v1518 = vadd.f32 0.0, %v1517
      %1519 = vmatmul.f32.gmra.mxu0 %v1135
      %v1520 = vpop.f32.mrf.mxu0
      %v1521 = vadd.f32 0.0, %v1520
      %1522 = vmatmul.f32.gmra.mxu0 %v1138
      %v1523 = vpop.f32.mrf.mxu0
      %v1524 = vadd.f32 0.0, %v1523
      %1525 = vmatmul.f32.gmra.mxu0 %v1141
      %v1526 = vpop.f32.mrf.mxu0
      %v1527 = vadd.f32 0.0, %v1526
      %1528 = vmatmul.f32.gmra.mxu0 %v1144
      %v1529 = vpop.f32.mrf.mxu0
      %v1530 = vadd.f32 0.0, %v1529
      %1531 = vmatmul.f32.gmra.mxu0 %v1147
      %v1532 = vpop.f32.mrf.mxu0
      %v1533 = vadd.f32 0.0, %v1532
      %1534 = vmatmul.f32.gmra.mxu0 %v1150
      %v1535 = vpop.f32.mrf.mxu0
      %v1536 = vadd.f32 0.0, %v1535
      %1537 = vmatmul.f32.gmra.mxu0 %v1153
      %v1538 = vpop.f32.mrf.mxu0
      %v1539 = vadd.f32 0.0, %v1538
      %1540 = vmatmul.f32.gmra.mxu0 %v1156
      %v1541 = vpop.f32.mrf.mxu0
      %v1542 = vadd.f32 0.0, %v1541
      %1543 = vmatmul.f32.gmra.mxu0 %v1159
      %v1544 = vpop.f32.mrf.mxu0
      %v1545 = vadd.f32 0.0, %v1544
      %1546 = vmatmul.f32.gmra.mxu0 %v1162
      %v1547 = vpop.f32.mrf.mxu0
      %v1548 = vadd.f32 0.0, %v1547
      %1549 = vmatmul.f32.gmra.mxu0 %v1165
      %v1550 = vpop.f32.mrf.mxu0
      %v1551 = vadd.f32 0.0, %v1550
      %1552 = vmatmul.f32.gmra.mxu0 %v1168
      %v1553 = vpop.f32.mrf.mxu0
      %v1554 = vadd.f32 0.0, %v1553
      %1555 = vmatmul.f32.gmra.mxu0 %v1171
      %v1556 = vpop.f32.mrf.mxu0
      %v1557 = vadd.f32 0.0, %v1556
      %1558 = vmatmul.f32.gmra.mxu0 %v1174
      %v1559 = vpop.f32.mrf.mxu0
      %v1560 = vadd.f32 0.0, %v1559
      %1561 = vmatmul.f32.gmra.mxu0 %v1177
      %v1562 = vpop.f32.mrf.mxu0
      %v1563 = vadd.f32 0.0, %v1562
      %1564 = vmatmul.f32.gmra.mxu0 %v1180
      %v1565 = vpop.f32.mrf.mxu0
      %v1566 = vadd.f32 0.0, %v1565
      %1567 = vmatmul.f32.gmra.mxu0 %v1183
      %v1568 = vpop.f32.mrf.mxu0
      %v1569 = vadd.f32 0.0, %v1568
      %1570 = vmatmul.f32.gmra.mxu0 %v1186
      %v1571 = vpop.f32.mrf.mxu0
      %v1572 = vadd.f32 0.0, %v1571
      %1573 = vmatmul.f32.gmra.mxu0 %v1189
      %v1574 = vpop.f32.mrf.mxu0
      %v1575 = vadd.f32 0.0, %v1574
      %1576 = vmatmul.f32.gmra.mxu0 %v1192
      %v1577 = vpop.f32.mrf.mxu0
      %v1578 = vadd.f32 0.0, %v1577
      %1579 = vmatmul.f32.gmra.mxu0 %v1195
      %v1580 = vpop.f32.mrf.mxu0
      %v1581 = vadd.f32 0.0, %v1580
      %1582 = vmatmul.f32.gmra.mxu0 %v1198
      %v1583 = vpop.f32.mrf.mxu0
      %v1584 = vadd.f32 0.0, %v1583
      %1585 = vmatmul.f32.gmra.mxu0 %v1471
      %v1586 = vpop.f32.mrf.mxu0
      %v1587 = vadd.f32 0.0, %v1586
      %1588 = vmatmul.f32.gmra.mxu0 %v1474
      %v1589 = vpop.f32.mrf.mxu0
      %v1590 = vadd.f32 0.0, %v1589
      %1591 = vdwg.mxu0
      %v1592 = vadd.f32 %v1344, %v1497
      %v1593 = vadd.f32 %v1347, %v1500
      %v1594 = vadd.f32 %v1350, %v1503
      %v1595 = vadd.f32 %v1353, %v1506
      %v1596 = vadd.f32 %v1356, %v1509
      %v1597 = vadd.f32 %v1359, %v1512
      %v1598 = vadd.f32 %v1362, %v1515
      %v1599 = vadd.f32 %v1365, %v1518
      %v1600 = vadd.f32 %v1368, %v1521
      %v1601 = vadd.f32 %v1371, %v1524
      %v1602 = vadd.f32 %v1374, %v1527
      %v1603 = vadd.f32 %v1377, %v1530
      %v1604 = vadd.f32 %v1380, %v1533
      %v1605 = vadd.f32 %v1383, %v1536
      %v1606 = vadd.f32 %v1386, %v1539
      %v1607 = vadd.f32 %v1389, %v1542
      %v1608 = vadd.f32 %v1392, %v1545
      %v1609 = vadd.f32 %v1395, %v1548
      %v1610 = vadd.f32 %v1398, %v1551
      %v1611 = vadd.f32 %v1401, %v1554
      %v1612 = vadd.f32 %v1404, %v1557
      %v1613 = vadd.f32 %v1407, %v1560
      %v1614 = vadd.f32 %v1410, %v1563
      %v1615 = vadd.f32 %v1413, %v1566
      %v1616 = vadd.f32 %v1416, %v1569
      %v1617 = vadd.f32 %v1419, %v1572
      %v1618 = vadd.f32 %v1422, %v1575
      %v1619 = vadd.f32 %v1425, %v1578
      %v1620 = vadd.f32 %v1428, %v1581
      %v1621 = vadd.f32 %v1431, %v1584
      %v1622 = vadd.f32 %v1434, %v1587
      %v1623 = vadd.f32 %v1437, %v1590
      %v1624 = vld [vmem:[%s4] sm:$0x1]
      %v1626 = vperm.slane %v1624, 0
      %v1628 = vadd.f32 %v1592, %v1626
      %v1629 = vadd.f32 %v1593, %v1626
      %v1630 = vadd.f32 %v1594, %v1626
      %v1631 = vadd.f32 %v1595, %v1626
      %v1632 = vadd.f32 %v1596, %v1626
      %v1633 = vadd.f32 %v1597, %v1626
      %v1634 = vadd.f32 %v1598, %v1626
      %v1635 = vadd.f32 %v1599, %v1626
      %v1636 = vadd.f32 %v1600, %v1626
      %v1637 = vadd.f32 %v1601, %v1626
      %v1638 = vadd.f32 %v1602, %v1626
      %v1639 = vadd.f32 %v1603, %v1626
      %v1640 = vadd.f32 %v1604, %v1626
      %v1641 = vadd.f32 %v1605, %v1626
      %v1642 = vadd.f32 %v1606, %v1626
      %v1643 = vadd.f32 %v1607, %v1626
      %v1644 = vadd.f32 %v1608, %v1626
      %v1645 = vadd.f32 %v1609, %v1626
      %v1646 = vadd.f32 %v1610, %v1626
      %v1647 = vadd.f32 %v1611, %v1626
      %v1648 = vadd.f32 %v1612, %v1626
      %v1649 = vadd.f32 %v1613, %v1626
      %v1650 = vadd.f32 %v1614, %v1626
      %v1651 = vadd.f32 %v1615, %v1626
      %v1652 = vadd.f32 %v1616, %v1626
      %v1653 = vadd.f32 %v1617, %v1626
      %v1654 = vadd.f32 %v1618, %v1626
      %v1655 = vadd.f32 %v1619, %v1626
      %v1656 = vadd.f32 %v1620, %v1626
      %v1657 = vadd.f32 %v1621, %v1626
      %v1658 = vadd.f32 %v1622, %v1626
      %v1659 = vadd.f32 %v1623, %v1626
      %v1660 = vmax.f32 %v1628, 0.0
      %v1661 = vmax.f32 %v1629, 0.0
      %v1662 = vmax.f32 %v1630, 0.0
      %v1663 = vmax.f32 %v1631, 0.0
      %v1664 = vmax.f32 %v1632, 0.0
      %v1665 = vmax.f32 %v1633, 0.0
      %v1666 = vmax.f32 %v1634, 0.0
      %v1667 = vmax.f32 %v1635, 0.0
      %v1668 = vmax.f32 %v1636, 0.0
      %v1669 = vmax.f32 %v1637, 0.0
      %v1670 = vmax.f32 %v1638, 0.0
      %v1671 = vmax.f32 %v1639, 0.0
      %v1672 = vmax.f32 %v1640, 0.0
      %v1673 = vmax.f32 %v1641, 0.0
      %v1674 = vmax.f32 %v1642, 0.0
      %v1675 = vmax.f32 %v1643, 0.0
      %v1676 = vmax.f32 %v1644, 0.0
      %v1677 = vmax.f32 %v1645, 0.0
      %v1678 = vmax.f32 %v1646, 0.0
      %v1679 = vmax.f32 %v1647, 0.0
      %v1680 = vmax.f32 %v1648, 0.0
      %v1681 = vmax.f32 %v1649, 0.0
      %v1682 = vmax.f32 %v1650, 0.0
      %v1683 = vmax.f32 %v1651, 0.0
      %v1684 = vmax.f32 %v1652, 0.0
      %v1685 = vmax.f32 %v1653, 0.0
      %v1686 = vmax.f32 %v1654, 0.0
      %v1687 = vmax.f32 %v1655, 0.0
      %v1688 = vmax.f32 %v1656, 0.0
      %v1689 = vmax.f32 %v1657, 0.0
      %v1690 = vmax.f32 %v1658, 0.0
      %v1691 = vmax.f32 %v1659, 0.0
      %1692 = vst.msk [vmem:[%s391] sm:$0xff] %vm1004, %v393
      %1693 = vst.msk [vmem:[%s391 + $0x8] sm:$0xff] %vm1004, %v394
      %1694 = vst.msk [vmem:[%s391 + $0x10] sm:$0xff] %vm1004, %v395
      %1695 = vst.msk [vmem:[%s391 + $0x18] sm:$0xff] %vm1004, %v396
      %1696 = vst.msk [vmem:[%s391 + $0x20] sm:$0xff] %vm1004, %v397
      %1697 = vst.msk [vmem:[%s391 + $0x28] sm:$0xff] %vm1004, %v398
      %1698 = vst.msk [vmem:[%s391 + $0x30] sm:$0xff] %vm1004, %v399
      %1699 = vst.msk [vmem:[%s391 + $0x38] sm:$0xff] %vm1004, %v400
      %1700 = vst.msk [vmem:[%s391 + $0x40] sm:$0xff] %vm1004, %v401
      %1701 = vst.msk [vmem:[%s391 + $0x48] sm:$0xff] %vm1004, %v402
      %1702 = vst.msk [vmem:[%s391 + $0x50] sm:$0xff] %vm1004, %v403
      %1703 = vst.msk [vmem:[%s391 + $0x58] sm:$0xff] %vm1004, %v404
      %1704 = vst.msk [vmem:[%s391 + $0x60] sm:$0xff] %vm1004, %v405
      %1705 = vst.msk [vmem:[%s391 + $0x68] sm:$0xff] %vm1004, %v406
      %1706 = vst.msk [vmem:[%s391 + $0x70] sm:$0xff] %vm1004, %v407
      %1707 = vst.msk [vmem:[%s391 + $0x78] sm:$0xff] %vm1004, %v408
      %1708 = vst.msk [vmem:[%s391 + $0x80] sm:$0xff] %vm1004, %v409
      %1709 = vst.msk [vmem:[%s391 + $0x88] sm:$0xff] %vm1004, %v410
      %1710 = vst.msk [vmem:[%s391 + $0x90] sm:$0xff] %vm1004, %v411
      %1711 = vst.msk [vmem:[%s391 + $0x98] sm:$0xff] %vm1004, %v412
      %1712 = vst.msk [vmem:[%s391 + $0xa0] sm:$0xff] %vm1004, %v413
      %1713 = vst.msk [vmem:[%s391 + $0xa8] sm:$0xff] %vm1004, %v414
      %1714 = vst.msk [vmem:[%s391 + $0xb0] sm:$0xff] %vm1004, %v415
      %1715 = vst.msk [vmem:[%s391 + $0xb8] sm:$0xff] %vm1004, %v416
      %1716 = vst.msk [vmem:[%s391 + $0xc0] sm:$0xff] %vm1004, %v417
      %1717 = vst.msk [vmem:[%s391 + $0xc8] sm:$0xff] %vm1004, %v418
      %1718 = vst.msk [vmem:[%s391 + $0xd0] sm:$0xff] %vm1004, %v419
      %1719 = vst.msk [vmem:[%s391 + $0xd8] sm:$0xff] %vm1004, %v420
      %1720 = vst.msk [vmem:[%s391 + $0xe0] sm:$0xff] %vm1004, %v421
      %1721 = vst.msk [vmem:[%s391 + $0xe8] sm:$0xff] %vm1004, %v422
      %1722 = vst.msk [vmem:[%s391 + $0xf0] sm:$0xff] %vm1004, %v423
      %1723 = vst.msk [vmem:[%s391 + $0xf8] sm:$0xff] %vm1004, %v424
      %1756 = vrot.lane.b32.xlu0 %v1660, 4
      %v1757 = vpop.permute.xlu0 %1756
      %1758 = vrot.lane.b32.xlu0 %v1661, 4
      %v1759 = vpop.permute.xlu0 %1758
      %1760 = vrot.lane.b32.xlu0 %v1662, 4
      %v1761 = vpop.permute.xlu0 %1760
      %1762 = vrot.lane.b32.xlu0 %v1663, 4
      %v1763 = vpop.permute.xlu0 %1762
      %1764 = vrot.lane.b32.xlu0 %v1664, 4
      %v1765 = vpop.permute.xlu0 %1764
      %1766 = vrot.lane.b32.xlu0 %v1665, 4
      %v1767 = vpop.permute.xlu0 %1766
      %1768 = vrot.lane.b32.xlu0 %v1666, 4
      %v1769 = vpop.permute.xlu0 %1768
      %1770 = vrot.lane.b32.xlu0 %v1667, 4
      %v1771 = vpop.permute.xlu0 %1770
      %1772 = vrot.lane.b32.xlu0 %v1668, 4
      %v1773 = vpop.permute.xlu0 %1772
      %1774 = vrot.lane.b32.xlu0 %v1669, 4
      %v1775 = vpop.permute.xlu0 %1774
      %1776 = vrot.lane.b32.xlu0 %v1670, 4
      %v1777 = vpop.permute.xlu0 %1776
      %1778 = vrot.lane.b32.xlu0 %v1671, 4
      %v1779 = vpop.permute.xlu0 %1778
      %1780 = vrot.lane.b32.xlu0 %v1672, 4
      %v1781 = vpop.permute.xlu0 %1780
      %1782 = vrot.lane.b32.xlu0 %v1673, 4
      %v1783 = vpop.permute.xlu0 %1782
      %1784 = vrot.lane.b32.xlu0 %v1674, 4
      %v1785 = vpop.permute.xlu0 %1784
      %1786 = vrot.lane.b32.xlu0 %v1675, 4
      %v1787 = vpop.permute.xlu0 %1786
      %1788 = vrot.lane.b32.xlu0 %v1676, 4
      %v1789 = vpop.permute.xlu0 %1788
      %1790 = vrot.lane.b32.xlu0 %v1677, 4
      %v1791 = vpop.permute.xlu0 %1790
      %1792 = vrot.lane.b32.xlu0 %v1678, 4
      %v1793 = vpop.permute.xlu0 %1792
      %1794 = vrot.lane.b32.xlu0 %v1679, 4
      %v1795 = vpop.permute.xlu0 %1794
      %1796 = vrot.lane.b32.xlu0 %v1680, 4
      %v1797 = vpop.permute.xlu0 %1796
      %1798 = vrot.lane.b32.xlu0 %v1681, 4
      %v1799 = vpop.permute.xlu0 %1798
      %1800 = vrot.lane.b32.xlu0 %v1682, 4
      %v1801 = vpop.permute.xlu0 %1800
      %1802 = vrot.lane.b32.xlu0 %v1683, 4
      %v1803 = vpop.permute.xlu0 %1802
      %1804 = vrot.lane.b32.xlu0 %v1684, 4
      %v1805 = vpop.permute.xlu0 %1804
      %1806 = vrot.lane.b32.xlu0 %v1685, 4
      %v1807 = vpop.permute.xlu0 %1806
      %1808 = vrot.lane.b32.xlu0 %v1686, 4
      %v1809 = vpop.permute.xlu0 %1808
      %1810 = vrot.lane.b32.xlu0 %v1687, 4
      %v1811 = vpop.permute.xlu0 %1810
      %1812 = vrot.lane.b32.xlu0 %v1688, 4
      %v1813 = vpop.permute.xlu0 %1812
      %1814 = vrot.lane.b32.xlu0 %v1689, 4
      %v1815 = vpop.permute.xlu0 %1814
      %1816 = vrot.lane.b32.xlu0 %v1690, 4
      %v1817 = vpop.permute.xlu0 %1816
      %1818 = vrot.lane.b32.xlu0 %v1691, 4
      %v1819 = vpop.permute.xlu0 %1818
      %vm1852 = vcmask 97312
      %1853 = vst.msk [vmem:[%s391] sm:$0xff] %vm1852, %v1757
      %1854 = vst.msk [vmem:[%s391 + $0x8] sm:$0xff] %vm1852, %v1759
      %1855 = vst.msk [vmem:[%s391 + $0x10] sm:$0xff] %vm1852, %v1761
      %1856 = vst.msk [vmem:[%s391 + $0x18] sm:$0xff] %vm1852, %v1763
      %1857 = vst.msk [vmem:[%s391 + $0x20] sm:$0xff] %vm1852, %v1765
      %1858 = vst.msk [vmem:[%s391 + $0x28] sm:$0xff] %vm1852, %v1767
      %1859 = vst.msk [vmem:[%s391 + $0x30] sm:$0xff] %vm1852, %v1769
      %1860 = vst.msk [vmem:[%s391 + $0x38] sm:$0xff] %vm1852, %v1771
      %1861 = vst.msk [vmem:[%s391 + $0x40] sm:$0xff] %vm1852, %v1773
      %1862 = vst.msk [vmem:[%s391 + $0x48] sm:$0xff] %vm1852, %v1775
      %1863 = vst.msk [vmem:[%s391 + $0x50] sm:$0xff] %vm1852, %v1777
      %1864 = vst.msk [vmem:[%s391 + $0x58] sm:$0xff] %vm1852, %v1779
      %1865 = vst.msk [vmem:[%s391 + $0x60] sm:$0xff] %vm1852, %v1781
      %1866 = vst.msk [vmem:[%s391 + $0x68] sm:$0xff] %vm1852, %v1783
      %1867 = vst.msk [vmem:[%s391 + $0x70] sm:$0xff] %vm1852, %v1785
      %1868 = vst.msk [vmem:[%s391 + $0x78] sm:$0xff] %vm1852, %v1787
      %1869 = vst.msk [vmem:[%s391 + $0x80] sm:$0xff] %vm1852, %v1789
      %1870 = vst.msk [vmem:[%s391 + $0x88] sm:$0xff] %vm1852, %v1791
      %1871 = vst.msk [vmem:[%s391 + $0x90] sm:$0xff] %vm1852, %v1793
      %1872 = vst.msk [vmem:[%s391 + $0x98] sm:$0xff] %vm1852, %v1795
      %1873 = vst.msk [vmem:[%s391 + $0xa0] sm:$0xff] %vm1852, %v1797
      %1874 = vst.msk [vmem:[%s391 + $0xa8] sm:$0xff] %vm1852, %v1799
      %1875 = vst.msk [vmem:[%s391 + $0xb0] sm:$0xff] %vm1852, %v1801
      %1876 = vst.msk [vmem:[%s391 + $0xb8] sm:$0xff] %vm1852, %v1803
      %1877 = vst.msk [vmem:[%s391 + $0xc0] sm:$0xff] %vm1852, %v1805
      %1878 = vst.msk [vmem:[%s391 + $0xc8] sm:$0xff] %vm1852, %v1807
      %1879 = vst.msk [vmem:[%s391 + $0xd0] sm:$0xff] %vm1852, %v1809
      %1880 = vst.msk [vmem:[%s391 + $0xd8] sm:$0xff] %vm1852, %v1811
      %1881 = vst.msk [vmem:[%s391 + $0xe0] sm:$0xff] %vm1852, %v1813
      %1882 = vst.msk [vmem:[%s391 + $0xe8] sm:$0xff] %vm1852, %v1815
      %1883 = vst.msk [vmem:[%s391 + $0xf0] sm:$0xff] %vm1852, %v1817
      %1884 = vst.msk [vmem:[%s391 + $0xf8] sm:$0xff] %vm1852, %v1819
      %s1885 = smul.u32 16, %s21
      %p1886 = scmp.lt.s32.totalorder %s20, 1
      %s1887 = scalar_select %p1886, %s20, 1
      %p1888 = scmp.lt.s32.totalorder %s1885, 15
      %s1889 = scalar_select %p1888, %s1885, 15
      %s1890 = smul.addr %s1889, 2
      %s1891 = smul.addr %s1887, 32
      %s1892 = sadd.s32 %s1890, %s1891
      %s1893 = smul.addr %s1892, 8
      %s1894 = scalar_lea.vmem %s5, %s1893
      // Predicated region
      $region41: #{tpu_custom_call.1} parent=39 // pred_check
        %p1895 = pneg %p190
      $region42: #{tpu_custom_call.1} parent=39 // pred_check_branch
        %1897 = sbr.rel (%p1895) target = $region44
      $region43: #{tpu_custom_call.1} parent=39 // pred_region
        %s1898 = smul.u32 16, %s21
      $region44: #{tpu_custom_call.1} parent=39 // pred_fallthru
        _
    $region40: #{tpu_custom_call.1} parent=5 // pred_fallthru
      _
    %p1899 = scmp.le.s32.totalorder 2, %s11
    // Predicated region
    $region45: #{tpu_custom_call.1} parent=5 // pred_check
      %p1900 = pneg %p1899
    $region46: #{tpu_custom_call.1} parent=5 // pred_check_branch
      %1902 = sbr.rel (%p1900) target = $region48
    $region47: #{tpu_custom_call.1} parent=5 // pred_region
      %s1903 = ssub.s32 %s11, 2
      // Predicated region
      $region49: #{tpu_custom_call.1} parent=47 // pred_check
        %p1904 = pneg %p196
      $region50: #{tpu_custom_call.1} parent=47 // pred_check_branch
        %1906 = sbr.rel (%p1904) target = $region52
      $region51: #{tpu_custom_call.1} parent=47 // pred_region
        %s1907 = smul.u32 16, %s23
        %p1908 = scmp.lt.s32.totalorder %s22, 1
        %s1909 = scalar_select %p1908, %s22, 1
        %p1910 = scmp.lt.s32.totalorder %s1907, 15
        %s1911 = scalar_select %p1910, %s1907, 15
        %s1912 = smul.addr %s1911, 2
        %s1913 = smul.addr %s1909, 32
        %s1914 = sadd.s32 %s1912, %s1913
        %s1915 = smul.addr %s1914, 8
        %s1916 = scalar_lea.vmem %s5, %s1915
      $region52: #{tpu_custom_call.1} parent=47 // pred_fallthru
        _
    $region48: #{tpu_custom_call.1} parent=5 // pred_fallthru
      _
  $region6: #{tpu_custom_call.1} parent=0 // loop_footer
    %s15 = sadd.s32 1, %s11
  $region7: #{tpu_custom_call.1} parent=0 // loop_footer_branch
    %10 = sbr.rel target = $region3
  $region8: #{tpu_custom_call.1} parent=0 // loop_exit
    _

</llo_original>
